<compile_context>
chip_gen: v7x
topology: tpu7x:2x2x1
jax: 0.10.0
libtpu: 0.0.40
codegen_flags: <defaults>
</compile_context>

<pallas_src>
import jax
import jax.numpy as jnp
from jax.experimental import pallas as pl
from jax.experimental.pallas import tpu as pltpu

NEG_SLOPE = 0.01      # nn.LeakyReLU(negative_slope=0.01)
LANE = 128            # TPU lane width
SUBLANE = 8           # TPU sublane width


def _leaky(x):
    # leaky_relu(x) = max(x, 0.01*x) for slope in (0, 1)
    return jnp.maximum(x, NEG_SLOPE * x)


def _round_up(x, m):
    return (x + m - 1) // m * m


def _make_tcn_kernel(num_layers, K, L, cmax, P0, Wg, has_downsample, cdt):
    """Fused TCN kernel: all layers, one batch block per grid step."""

    def kernel(dm_ref, x_ref, w_ref, b_ref, wd_ref, bd_ref, o_ref, stage_ref):
        # dm_ref   : (1, Wg) int32      1 on real (element, t) lanes, 0 on gap/pad lanes
        # x_ref    : (1, Cmax, Wg)      activations for this batch block (gapped layout)
        # w_ref    : (NL*2*K, Cmax, Cmax) per-tap conv weights (layer-major, conv1 then conv2)
        # b_ref    : (NL*2, Cmax, 1)    conv biases (f32)
        # wd_ref   : (NL, Cmax, Cmax)   1x1 downsample weights; bd_ref: (NL, Cmax, 1)
        # stage_ref: (Cmax, P0 + Wg)    VMEM staging buffer in matmul dtype
        data_mask = dm_ref[...] != 0
        h = x_ref[0].astype(jnp.float32)       # elementwise path stays f32 (v5e VPU)

        # The left pad region [0, P0) of the staging buffer is only ever read by
        # don't-care gap lanes; zero it once so the output slab stays finite.
        if P0 > 0:
            stage_ref[:, pl.ds(0, P0)] = jnp.zeros((cmax, P0), cdt)

        def stage(act):
            # One select + one cast per conv: gap lanes become the causal zeros.
            stage_ref[:, pl.ds(P0, Wg)] = jnp.where(data_mask, act, 0.0).astype(cdt)

        def causal_conv(w_base, bias, dil):
            # K per-tap MXU matmuls accumulated in f32.  Shifted operands are
            # statically-offset views of the staged activation (no roll/mask).
            acc = None
            for j in range(K):
                s = (K - 1 - j) * dil
                if s >= L:          # tap reads only causal padding -> contributes 0
                    continue
                src = stage_ref[:, pl.ds(P0 - s, Wg)]
                y = jnp.dot(w_ref[w_base + j], src,
                            preferred_element_type=jnp.float32)
                acc = y if acc is None else acc + y
            return acc + bias       # s == 0 tap always present -> acc is not None

        for layer in range(num_layers):
            dil = 2 ** layer
            base = layer * 2 * K
            stage(h)
            z1 = causal_conv(base, b_ref[2 * layer], dil)
            if has_downsample[layer]:
                # 1x1 downsample reuses the staged (already cast) copy of h
                # before conv2 overwrites the staging buffer.
                res = jnp.dot(wd_ref[layer], stage_ref[:, pl.ds(P0, Wg)],
                              preferred_element_type=jnp.float32) + bd_ref[layer]
            else:
                res = h                           # identity residual: no matmul
            h1 = _leaky(z1)
            stage(h1)
            h2 = _leaky(causal_conv(base + K, b_ref[2 * layer + 1], dil))
            h = _leaky(h2 + res)

        o_ref[0] = h.astype(o_ref.dtype)

    return kernel


def _pad_mat(w, cmax):
    co, ci = w.shape
    return jnp.zeros((cmax, cmax), jnp.float32).at[:co, :ci].set(w)


def _pad_vec(v, cmax):
    return jnp.zeros((cmax,), jnp.float32).at[:v.shape[0]].set(v)


def temporal_conv_net_pallas(x, params, kernel_size, *, use_bf16=True,
                             out_dtype=None, target_lanes=2048,
                             vmem_budget_bytes=28 << 20):
    """Fused TCN forward.  x: (B, Cin, L); params: list of (w1,b1,w2,b2,wd,bd).

    wd/bd are None when n_inputs == n_outputs (identity residual).
    use_bf16 (default) casts matmul operands to bf16 with f32 accumulation.
    """
    B, cin0, L = x.shape
    K = kernel_size
    num_layers = len(params)
    channels = [cin0] + [p[0].shape[0] for p in params]
    cout_last = channels[-1]
    cmax = _round_up(max(channels), SUBLANE)
    cdt = jnp.bfloat16 if use_bf16 else jnp.float32
    out_dtype = x.dtype if out_dtype is None else out_dtype

    # Per-element causal gap: covers every tap shift actually used by any layer
    # (taps with shift >= L are skipped at trace time).
    max_shift = (K - 1) * 2 ** (num_layers - 1)
    S_g = min(max_shift, max(L - 1, 0))
    per_elem = S_g + L
    P0 = _round_up(S_g, LANE) if S_g > 0 else 0

    # ---- geometry: pack batch onto the lane axis; pick a wide lane block ----
    # Per-grid-step overhead is ~0.35us, so target ~1-4K lanes per step, capped
    # by a VMEM budget small enough to be portable to v7x (64 MiB physical).
    csz = jnp.dtype(cdt).itemsize
    osz = jnp.dtype(out_dtype).itemsize
    # 2x double-buffered input + staging (cdt) + 2x output + ~6 live f32 temps
    bytes_per_lane = cmax * (3 * csz + 2 * osz + 6 * 4)
    lane_cap = max(LANE, (vmem_budget_bytes // bytes_per_lane) // LANE * LANE)
    tgt = max(LANE, min(target_lanes, lane_cap))
    bb = max(1, min(B, tgt // per_elem))         # batch elements per grid block
    nb = pl.cdiv(B, bb)                          # grid steps ("parallel")
    # v7x has 2 TensorCores: prefer an even, >1 number of grid steps when the
    # per-step block stays reasonably wide (>= 4*128 lanes).
    if nb == 1 and B > 1 and ((B + 1) // 2) * per_elem >= 4 * LANE:
        bb = (B + 1) // 2
        nb = pl.cdiv(B, bb)
    elif nb % 2 == 1 and nb > 1:
        bb_alt = pl.cdiv(B, nb + 1)
        if bb_alt * per_elem >= 4 * LANE:
            bb = bb_alt
            nb = pl.cdiv(B, bb)
    b_pad = nb * bb
    Wg = _round_up(bb * per_elem, LANE)

    # ---- pack activations: (B, Cin, L) -> (nb, Cmax, Wg), gapped lane layout ----
    xp = jnp.zeros((b_pad, cmax, per_elem), jnp.float32)
    xp = xp.at[:B, :cin0, S_g:].set(x.astype(jnp.float32))
    xp = xp.reshape(nb, bb, cmax, per_elem).transpose(0, 2, 1, 3)
    xp = xp.reshape(nb, cmax, bb * per_elem)
    xp = jnp.pad(xp, ((0, 0), (0, 0), (0, Wg - bb * per_elem))).astype(cdt)

    lane = jnp.arange(Wg, dtype=jnp.int32)
    data_mask = ((lane < bb * per_elem) & (lane % per_elem >= S_g))
    data_mask = data_mask.astype(jnp.int32)[None, :]                 # (1, Wg)

    # ---- pack weights (tiny; resident in VMEM for the whole kernel) ----
    wconv, bconv, wd_l, bd_l, has_down = [], [], [], [], []
    for (w1, b1, w2, b2, wd, bd) in params:
        for w in (w1, w2):
            for j in range(K):
                wconv.append(_pad_mat(w[:, :, j], cmax))
        bconv.append(_pad_vec(b1, cmax))
        bconv.append(_pad_vec(b2, cmax))
        if wd is None:
            has_down.append(False)
            wd_l.append(jnp.zeros((cmax, cmax), jnp.float32))
            bd_l.append(jnp.zeros((cmax,), jnp.float32))
        else:
            has_down.append(True)
            wd_l.append(_pad_mat(wd, cmax))
            bd_l.append(_pad_vec(bd, cmax))
    wconv_all = jnp.stack(wconv).astype(cdt)             # (NL*2*K, Cmax, Cmax)
    bconv_all = jnp.stack(bconv)[..., None]              # (NL*2, Cmax, 1) f32
    wd_all = jnp.stack(wd_l).astype(cdt)                 # (NL, Cmax, Cmax)
    bd_all = jnp.stack(bd_l)[..., None]                  # (NL, Cmax, 1) f32

    kernel = _make_tcn_kernel(num_layers, K, L, cmax, P0, Wg,
                              tuple(has_down), cdt)

    grid_spec = pltpu.PrefetchScalarGridSpec(
        num_scalar_prefetch=0,
        grid=(nb,),
        in_specs=[
            pl.BlockSpec((1, Wg), lambda b: (0, 0)),                           # data mask
            pl.BlockSpec((1, cmax, Wg), lambda b: (b, 0, 0)),                  # x block
            pl.BlockSpec((num_layers * 2 * K, cmax, cmax), lambda b: (0, 0, 0)),
            pl.BlockSpec((num_layers * 2, cmax, 1), lambda b: (0, 0, 0)),
            pl.BlockSpec((num_layers, cmax, cmax), lambda b: (0, 0, 0)),
            pl.BlockSpec((num_layers, cmax, 1), lambda b: (0, 0, 0)),
        ],
        out_specs=pl.BlockSpec((1, cmax, Wg), lambda b: (b, 0, 0)),
        scratch_shapes=[pltpu.VMEM((cmax, P0 + Wg), cdt)],                     # staging
    )
    out = pl.pallas_call(
        kernel,
        out_shape=jax.ShapeDtypeStruct((nb, cmax, Wg), out_dtype),
        grid_spec=grid_spec,
        compiler_params=pltpu.CompilerParams(
            dimension_semantics=("parallel",),
            vmem_limit_bytes=48 * 1024 * 1024,   # fits v7x's 64 MiB VMEM with headroom
        ),
    )(data_mask, xp, wconv_all, bconv_all, wd_all, bd_all)

    # ---- unpack back to (B, Cout, L) ----
    out = out[:, :, :bb * per_elem].reshape(nb, cmax, bb, per_elem)
    out = out.transpose(0, 2, 1, 3).reshape(b_pad, cmax, per_elem)
    return out[:B, :cout_last, S_g:]


def init_params(key, num_inputs, num_channels, kernel_size):
    """Deterministic synthetic parameters (weight_norm folded into w)."""
    params = []
    for i, cout in enumerate(num_channels):
        cin = num_inputs if i == 0 else num_channels[i - 1]
        key, k1, k2, k3, k4, k5, k6 = jax.random.split(key, 7)

        def wn_conv_weight(k, co, ci):
            # weight_norm: w = g * v / ||v||_per-out-channel ; g initialized to ||v||
            v = 0.01 * jax.random.normal(k, (co, ci, kernel_size), jnp.float32)
            norm = jnp.sqrt(jnp.sum(v * v, axis=(1, 2), keepdims=True))
            return (norm * v) / norm                    # effective weight

        w1 = wn_conv_weight(k1, cout, cin)              # (Cout, Cin, K)
        b1 = 0.1 * jax.random.normal(k2, (cout,), jnp.float32)
        w2 = wn_conv_weight(k3, cout, cout)
        b2 = 0.1 * jax.random.normal(k4, (cout,), jnp.float32)
        if cin != cout:
            wd = 0.01 * jax.random.normal(k5, (cout, cin), jnp.float32)
            bd = 0.1 * jax.random.normal(k6, (cout,), jnp.float32)
        else:                                           # downsample is None
            wd, bd = None, None
        params.append((w1, b1, w2, b2, wd, bd))
    return params


def reference(x, params, kernel_size):
    """Pure-JAX reference (conv_general_dilated) with identical semantics."""
    out = x
    for i, (w1, b1, w2, b2, wd, bd) in enumerate(params):
        d = 2 ** i
        p = (kernel_size - 1) * d

        def conv(h, w, b):
            y = jax.lax.conv_general_dilated(
                h, w, window_strides=(1,), padding=[(p, p)],
                rhs_dilation=(d,), dimension_numbers=("NCH", "OIH", "NCH"))
            y = y[:, :, :-p]                            # Chomp1d
            return y + b[None, :, None]

        h = _leaky(conv(out, w1, b1))
        h = _leaky(conv(h, w2, b2))
        if wd is None:
            res = out
        else:
            res = jnp.einsum("oc,bcl->bol", wd, out) + bd[None, :, None]
        out = _leaky(h + res)
    return out


if __name__ == "__main__":
    # TemporalConvNet(num_inputs=4, num_channels=[8, 8], kernel_size=3, stride=1, dropout=0.2)
    num_inputs, num_channels, kernel_size = 4, [8, 8], 3
    B, L = 2, 16

    key = jax.random.PRNGKey(0)
    kx, kp = jax.random.split(key)
    x = jax.random.normal(kx, (B, num_inputs, L), jnp.float32)      # (N, C, L)
    params = init_params(kp, num_inputs, num_channels, kernel_size)

    y_ref = reference(x, params, kernel_size)

    # Exact path: f32 matmul operands, f32 output.
    y32 = temporal_conv_net_pallas(x, params, kernel_size, use_bf16=False)
    y32 = jax.block_until_ready(y32)
    assert y32.shape == (B, num_channels[-1], L), y32.shape
    err32 = float(jnp.max(jnp.abs(y32 - y_ref)))
    assert err32 < 1e-3, f"f32 path max abs error {err32}"

    # Default fast path: bf16 matmul operands (f32 accumulate), bf16 output.
    ybf = temporal_conv_net_pallas(x, params, kernel_size, out_dtype=jnp.bfloat16)
    ybf = jax.block_until_ready(ybf)
    assert ybf.shape == (B, num_channels[-1], L), ybf.shape
    errbf = float(jnp.max(jnp.abs(ybf.astype(jnp.float32) - y_ref)))
    assert errbf < 3e-2, f"bf16 path max abs error {errbf}"

    print("KERNEL_OK")
</pallas_src>

<mosaic_0001>
module attributes {stable_mosaic.version = 11 : i64} {
  func.func @kernel(%arg0: i32, %arg1: memref<1x128xi32, #tpu.memory_space<vmem>>, %arg2: memref<1x8x128xf32, #tpu.memory_space<vmem>>, %arg3: memref<12x8x8xf32, #tpu.memory_space<vmem>>, %arg4: memref<4x8x1xf32, #tpu.memory_space<vmem>>, %arg5: memref<2x8x8xf32, #tpu.memory_space<vmem>>, %arg6: memref<2x8x1xf32, #tpu.memory_space<vmem>>, %arg7: memref<1x8x128xf32, #tpu.memory_space<vmem>>, %arg8: memref<8x256xf32, #tpu.memory_space<vmem>>) attributes {dimension_semantics = [#tpu.dimension_semantics<parallel>], iteration_bounds = array<i64: 1>, scalar_prefetch = 0 : i64, scratch_operands = 1 : i64, tpu.core_type = #tpu.core_type<tc>, window_params = [{pipeline_mode = #tpu.pipeline_mode<synchronous>, transform_indices = @transform_0, window_bounds = array<i64: 1, 128>}, {transform_indices = @transform_1, window_bounds = array<i64: 1, 8, 128>}, {pipeline_mode = #tpu.pipeline_mode<synchronous>, transform_indices = @transform_2, window_bounds = array<i64: 12, 8, 8>}, {pipeline_mode = #tpu.pipeline_mode<synchronous>, transform_indices = @transform_3, window_bounds = array<i64: 4, 8, 1>}, {pipeline_mode = #tpu.pipeline_mode<synchronous>, transform_indices = @transform_4, window_bounds = array<i64: 2, 8, 8>}, {pipeline_mode = #tpu.pipeline_mode<synchronous>, transform_indices = @transform_5, window_bounds = array<i64: 2, 8, 1>}, {transform_indices = @transform_6, window_bounds = array<i64: 1, 8, 128>}]} {
    %c0 = arith.constant 0 : index
    %c0_0 = arith.constant 0 : index
    %0 = vector.load %arg1[%c0, %c0_0] : memref<1x128xi32, #tpu.memory_space<vmem>>, vector<1x128xi32>
    %c0_i32 = arith.constant 0 : i32
    %1 = vector.broadcast %c0_i32 : i32 to vector<1x128xi32>
    %2 = arith.cmpi ne, %0, %1 : vector<1x128xi32>
    %c0_1 = arith.constant 0 : index
    %c0_2 = arith.constant 0 : index
    %c0_3 = arith.constant 0 : index
    %3 = vector.load %arg2[%c0_1, %c0_2, %c0_3] : memref<1x8x128xf32, #tpu.memory_space<vmem>>, vector<1x8x128xf32>
    %4 = vector.shape_cast %3 : vector<1x8x128xf32> to vector<8x128xf32>
    %cst = arith.constant 0.000000e+00 : f32
    %5 = vector.broadcast %cst : f32 to vector<8x128xf32>
    %c0_4 = arith.constant 0 : index
    %c0_5 = arith.constant 0 : index
    %6 = vector.load %arg8[%c0_4, %c0_5] : memref<8x256xf32, #tpu.memory_space<vmem>>, vector<8x128xf32>
    tpu.vector_store %arg8[%c0_4, %c0_5], %5 {strides = array<i32>} : memref<8x256xf32, #tpu.memory_space<vmem>>, vector<8x128xf32>,
    %cst_6 = arith.constant 0.000000e+00 : f32
    %7 = vector.shape_cast %2 : vector<1x128xi1> to vector<1x128xi1>
    %8 = vector.broadcast %7 : vector<1x128xi1> to vector<8x128xi1>
    %9 = vector.broadcast %cst_6 : f32 to vector<8x128xf32>
    %10 = arith.select %8, %4, %9 : vector<8x128xi1>, vector<8x128xf32>
    %c0_7 = arith.constant 0 : index
    %c128 = arith.constant 128 : index
    %11 = vector.load %arg8[%c0_7, %c128] : memref<8x256xf32, #tpu.memory_space<vmem>>, vector<8x128xf32>
    tpu.vector_store %arg8[%c0_7, %c128], %10 {strides = array<i32>} : memref<8x256xf32, #tpu.memory_space<vmem>>, vector<8x128xf32>,
    %c0_8 = arith.constant 0 : index
    %c0_9 = arith.constant 0 : index
    %c0_10 = arith.constant 0 : index
    %12 = vector.load %arg4[%c0_8, %c0_9, %c0_10] : memref<4x8x1xf32, #tpu.memory_space<vmem>>, vector<1x8x1xf32>
    %13 = vector.shape_cast %12 : vector<1x8x1xf32> to vector<8x1xf32>
    %c0_11 = arith.constant 0 : index
    %c126 = arith.constant 126 : index
    %14 = vector.load %arg8[%c0_11, %c126] : memref<8x256xf32, #tpu.memory_space<vmem>>, vector<8x128xf32>
    %c0_12 = arith.constant 0 : index
    %c0_13 = arith.constant 0 : index
    %c0_14 = arith.constant 0 : index
    %15 = vector.load %arg3[%c0_12, %c0_13, %c0_14] : memref<12x8x8xf32, #tpu.memory_space<vmem>>, vector<1x8x8xf32>
    %16 = vector.shape_cast %15 : vector<1x8x8xf32> to vector<8x8xf32>
    %cst_15 = arith.constant dense<0.000000e+00> : vector<8x128xf32>
    %17 = tpu.matmul %16, %14, %cst_15 {dimension_numbers = #tpu.dot_dimension_numbers<[1], [0], [0], [1], [0, 0, 1, 1], [], []>} : vector<8x8xf32>, vector<8x128xf32>, vector<8x128xf32> -> vector<8x128xf32>
    %c0_16 = arith.constant 0 : index
    %c127 = arith.constant 127 : index
    %18 = vector.load %arg8[%c0_16, %c127] : memref<8x256xf32, #tpu.memory_space<vmem>>, vector<8x128xf32>
    %c1 = arith.constant 1 : index
    %c0_17 = arith.constant 0 : index
    %c0_18 = arith.constant 0 : index
    %19 = vector.load %arg3[%c1, %c0_17, %c0_18] : memref<12x8x8xf32, #tpu.memory_space<vmem>>, vector<1x8x8xf32>
    %20 = vector.shape_cast %19 : vector<1x8x8xf32> to vector<8x8xf32>
    %cst_19 = arith.constant dense<0.000000e+00> : vector<8x128xf32>
    %21 = tpu.matmul %20, %18, %cst_19 {dimension_numbers = #tpu.dot_dimension_numbers<[1], [0], [0], [1], [0, 0, 1, 1], [], []>} : vector<8x8xf32>, vector<8x128xf32>, vector<8x128xf32> -> vector<8x128xf32>
    %22 = arith.addf %17, %21 : vector<8x128xf32>
    %c0_20 = arith.constant 0 : index
    %c128_21 = arith.constant 128 : index
    %23 = vector.load %arg8[%c0_20, %c128_21] : memref<8x256xf32, #tpu.memory_space<vmem>>, vector<8x128xf32>
    %c2 = arith.constant 2 : index
    %c0_22 = arith.constant 0 : index
    %c0_23 = arith.constant 0 : index
    %24 = vector.load %arg3[%c2, %c0_22, %c0_23] : memref<12x8x8xf32, #tpu.memory_space<vmem>>, vector<1x8x8xf32>
    %25 = vector.shape_cast %24 : vector<1x8x8xf32> to vector<8x8xf32>
    %cst_24 = arith.constant dense<0.000000e+00> : vector<8x128xf32>
    %26 = tpu.matmul %25, %23, %cst_24 {dimension_numbers = #tpu.dot_dimension_numbers<[1], [0], [0], [1], [0, 0, 1, 1], [], []>} : vector<8x8xf32>, vector<8x128xf32>, vector<8x128xf32> -> vector<8x128xf32>
    %27 = arith.addf %22, %26 : vector<8x128xf32>
    %28 = vector.broadcast %13 : vector<8x1xf32> to vector<8x128xf32>
    %29 = arith.addf %27, %28 : vector<8x128xf32>
    %c0_25 = arith.constant 0 : index
    %c0_26 = arith.constant 0 : index
    %c0_27 = arith.constant 0 : index
    %30 = vector.load %arg5[%c0_25, %c0_26, %c0_27] : memref<2x8x8xf32, #tpu.memory_space<vmem>>, vector<1x8x8xf32>
    %31 = vector.shape_cast %30 : vector<1x8x8xf32> to vector<8x8xf32>
    %c0_28 = arith.constant 0 : index
    %c128_29 = arith.constant 128 : index
    %32 = vector.load %arg8[%c0_28, %c128_29] : memref<8x256xf32, #tpu.memory_space<vmem>>, vector<8x128xf32>
    %cst_30 = arith.constant dense<0.000000e+00> : vector<8x128xf32>
    %33 = tpu.matmul %31, %32, %cst_30 {dimension_numbers = #tpu.dot_dimension_numbers<[1], [0], [0], [1], [0, 0, 1, 1], [], []>} : vector<8x8xf32>, vector<8x128xf32>, vector<8x128xf32> -> vector<8x128xf32>
    %c0_31 = arith.constant 0 : index
    %c0_32 = arith.constant 0 : index
    %c0_33 = arith.constant 0 : index
    %34 = vector.load %arg6[%c0_31, %c0_32, %c0_33] : memref<2x8x1xf32, #tpu.memory_space<vmem>>, vector<1x8x1xf32>
    %35 = vector.shape_cast %34 : vector<1x8x1xf32> to vector<8x1xf32>
    %36 = vector.broadcast %35 : vector<8x1xf32> to vector<8x128xf32>
    %37 = arith.addf %33, %36 : vector<8x128xf32>
    %cst_34 = arith.constant 0.00999999977 : f32
    %38 = vector.broadcast %cst_34 : f32 to vector<8x128xf32>
    %39 = arith.mulf %38, %29 : vector<8x128xf32>
    %40 = arith.maximumf %29, %39 : vector<8x128xf32>
    %cst_35 = arith.constant 0.000000e+00 : f32
    %41 = vector.shape_cast %2 : vector<1x128xi1> to vector<1x128xi1>
    %42 = vector.broadcast %41 : vector<1x128xi1> to vector<8x128xi1>
    %43 = vector.broadcast %cst_35 : f32 to vector<8x128xf32>
    %44 = arith.select %42, %40, %43 : vector<8x128xi1>, vector<8x128xf32>
    %c0_36 = arith.constant 0 : index
    %c128_37 = arith.constant 128 : index
    %45 = vector.load %arg8[%c0_36, %c128_37] : memref<8x256xf32, #tpu.memory_space<vmem>>, vector<8x128xf32>
    tpu.vector_store %arg8[%c0_36, %c128_37], %44 {strides = array<i32>} : memref<8x256xf32, #tpu.memory_space<vmem>>, vector<8x128xf32>,
    %c1_38 = arith.constant 1 : index
    %c0_39 = arith.constant 0 : index
    %c0_40 = arith.constant 0 : index
    %46 = vector.load %arg4[%c1_38, %c0_39, %c0_40] : memref<4x8x1xf32, #tpu.memory_space<vmem>>, vector<1x8x1xf32>
    %47 = vector.shape_cast %46 : vector<1x8x1xf32> to vector<8x1xf32>
    %c0_41 = arith.constant 0 : index
    %c126_42 = arith.constant 126 : index
    %48 = vector.load %arg8[%c0_41, %c126_42] : memref<8x256xf32, #tpu.memory_space<vmem>>, vector<8x128xf32>
    %c3 = arith.constant 3 : index
    %c0_43 = arith.constant 0 : index
    %c0_44 = arith.constant 0 : index
    %49 = vector.load %arg3[%c3, %c0_43, %c0_44] : memref<12x8x8xf32, #tpu.memory_space<vmem>>, vector<1x8x8xf32>
    %50 = vector.shape_cast %49 : vector<1x8x8xf32> to vector<8x8xf32>
    %cst_45 = arith.constant dense<0.000000e+00> : vector<8x128xf32>
    %51 = tpu.matmul %50, %48, %cst_45 {dimension_numbers = #tpu.dot_dimension_numbers<[1], [0], [0], [1], [0, 0, 1, 1], [], []>} : vector<8x8xf32>, vector<8x128xf32>, vector<8x128xf32> -> vector<8x128xf32>
    %c0_46 = arith.constant 0 : index
    %c127_47 = arith.constant 127 : index
    %52 = vector.load %arg8[%c0_46, %c127_47] : memref<8x256xf32, #tpu.memory_space<vmem>>, vector<8x128xf32>
    %c4 = arith.constant 4 : index
    %c0_48 = arith.constant 0 : index
    %c0_49 = arith.constant 0 : index
    %53 = vector.load %arg3[%c4, %c0_48, %c0_49] : memref<12x8x8xf32, #tpu.memory_space<vmem>>, vector<1x8x8xf32>
    %54 = vector.shape_cast %53 : vector<1x8x8xf32> to vector<8x8xf32>
    %cst_50 = arith.constant dense<0.000000e+00> : vector<8x128xf32>
    %55 = tpu.matmul %54, %52, %cst_50 {dimension_numbers = #tpu.dot_dimension_numbers<[1], [0], [0], [1], [0, 0, 1, 1], [], []>} : vector<8x8xf32>, vector<8x128xf32>, vector<8x128xf32> -> vector<8x128xf32>
    %56 = arith.addf %51, %55 : vector<8x128xf32>
    %c0_51 = arith.constant 0 : index
    %c128_52 = arith.constant 128 : index
    %57 = vector.load %arg8[%c0_51, %c128_52] : memref<8x256xf32, #tpu.memory_space<vmem>>, vector<8x128xf32>
    %c5 = arith.constant 5 : index
    %c0_53 = arith.constant 0 : index
    %c0_54 = arith.constant 0 : index
    %58 = vector.load %arg3[%c5, %c0_53, %c0_54] : memref<12x8x8xf32, #tpu.memory_space<vmem>>, vector<1x8x8xf32>
    %59 = vector.shape_cast %58 : vector<1x8x8xf32> to vector<8x8xf32>
    %cst_55 = arith.constant dense<0.000000e+00> : vector<8x128xf32>
    %60 = tpu.matmul %59, %57, %cst_55 {dimension_numbers = #tpu.dot_dimension_numbers<[1], [0], [0], [1], [0, 0, 1, 1], [], []>} : vector<8x8xf32>, vector<8x128xf32>, vector<8x128xf32> -> vector<8x128xf32>
    %61 = arith.addf %56, %60 : vector<8x128xf32>
    %62 = vector.broadcast %47 : vector<8x1xf32> to vector<8x128xf32>
    %63 = arith.addf %61, %62 : vector<8x128xf32>
    %cst_56 = arith.constant 0.00999999977 : f32
    %64 = vector.broadcast %cst_56 : f32 to vector<8x128xf32>
    %65 = arith.mulf %64, %63 : vector<8x128xf32>
    %66 = arith.maximumf %63, %65 : vector<8x128xf32>
    %67 = arith.addf %66, %37 : vector<8x128xf32>
    %cst_57 = arith.constant 0.00999999977 : f32
    %68 = vector.broadcast %cst_57 : f32 to vector<8x128xf32>
    %69 = arith.mulf %68, %67 : vector<8x128xf32>
    %70 = arith.maximumf %67, %69 : vector<8x128xf32>
    %cst_58 = arith.constant 0.000000e+00 : f32
    %71 = vector.shape_cast %2 : vector<1x128xi1> to vector<1x128xi1>
    %72 = vector.broadcast %71 : vector<1x128xi1> to vector<8x128xi1>
    %73 = vector.broadcast %cst_58 : f32 to vector<8x128xf32>
    %74 = arith.select %72, %70, %73 : vector<8x128xi1>, vector<8x128xf32>
    %c0_59 = arith.constant 0 : index
    %c128_60 = arith.constant 128 : index
    %75 = vector.load %arg8[%c0_59, %c128_60] : memref<8x256xf32, #tpu.memory_space<vmem>>, vector<8x128xf32>
    tpu.vector_store %arg8[%c0_59, %c128_60], %74 {strides = array<i32>} : memref<8x256xf32, #tpu.memory_space<vmem>>, vector<8x128xf32>,
    %c2_61 = arith.constant 2 : index
    %c0_62 = arith.constant 0 : index
    %c0_63 = arith.constant 0 : index
    %76 = vector.load %arg4[%c2_61, %c0_62, %c0_63] : memref<4x8x1xf32, #tpu.memory_space<vmem>>, vector<1x8x1xf32>
    %77 = vector.shape_cast %76 : vector<1x8x1xf32> to vector<8x1xf32>
    %c0_64 = arith.constant 0 : index
    %c124 = arith.constant 124 : index
    %78 = vector.load %arg8[%c0_64, %c124] : memref<8x256xf32, #tpu.memory_space<vmem>>, vector<8x128xf32>
    %c6 = arith.constant 6 : index
    %c0_65 = arith.constant 0 : index
    %c0_66 = arith.constant 0 : index
    %79 = vector.load %arg3[%c6, %c0_65, %c0_66] : memref<12x8x8xf32, #tpu.memory_space<vmem>>, vector<1x8x8xf32>
    %80 = vector.shape_cast %79 : vector<1x8x8xf32> to vector<8x8xf32>
    %cst_67 = arith.constant dense<0.000000e+00> : vector<8x128xf32>
    %81 = tpu.matmul %80, %78, %cst_67 {dimension_numbers = #tpu.dot_dimension_numbers<[1], [0], [0], [1], [0, 0, 1, 1], [], []>} : vector<8x8xf32>, vector<8x128xf32>, vector<8x128xf32> -> vector<8x128xf32>
    %c0_68 = arith.constant 0 : index
    %c126_69 = arith.constant 126 : index
    %82 = vector.load %arg8[%c0_68, %c126_69] : memref<8x256xf32, #tpu.memory_space<vmem>>, vector<8x128xf32>
    %c7 = arith.constant 7 : index
    %c0_70 = arith.constant 0 : index
    %c0_71 = arith.constant 0 : index
    %83 = vector.load %arg3[%c7, %c0_70, %c0_71] : memref<12x8x8xf32, #tpu.memory_space<vmem>>, vector<1x8x8xf32>
    %84 = vector.shape_cast %83 : vector<1x8x8xf32> to vector<8x8xf32>
    %cst_72 = arith.constant dense<0.000000e+00> : vector<8x128xf32>
    %85 = tpu.matmul %84, %82, %cst_72 {dimension_numbers = #tpu.dot_dimension_numbers<[1], [0], [0], [1], [0, 0, 1, 1], [], []>} : vector<8x8xf32>, vector<8x128xf32>, vector<8x128xf32> -> vector<8x128xf32>
    %86 = arith.addf %81, %85 : vector<8x128xf32>
    %c0_73 = arith.constant 0 : index
    %c128_74 = arith.constant 128 : index
    %87 = vector.load %arg8[%c0_73, %c128_74] : memref<8x256xf32, #tpu.memory_space<vmem>>, vector<8x128xf32>
    %c8 = arith.constant 8 : index
    %c0_75 = arith.constant 0 : index
    %c0_76 = arith.constant 0 : index
    %88 = vector.load %arg3[%c8, %c0_75, %c0_76] : memref<12x8x8xf32, #tpu.memory_space<vmem>>, vector<1x8x8xf32>
    %89 = vector.shape_cast %88 : vector<1x8x8xf32> to vector<8x8xf32>
    %cst_77 = arith.constant dense<0.000000e+00> : vector<8x128xf32>
    %90 = tpu.matmul %89, %87, %cst_77 {dimension_numbers = #tpu.dot_dimension_numbers<[1], [0], [0], [1], [0, 0, 1, 1], [], []>} : vector<8x8xf32>, vector<8x128xf32>, vector<8x128xf32> -> vector<8x128xf32>
    %91 = arith.addf %86, %90 : vector<8x128xf32>
    %92 = vector.broadcast %77 : vector<8x1xf32> to vector<8x128xf32>
    %93 = arith.addf %91, %92 : vector<8x128xf32>
    %cst_78 = arith.constant 0.00999999977 : f32
    %94 = vector.broadcast %cst_78 : f32 to vector<8x128xf32>
    %95 = arith.mulf %94, %93 : vector<8x128xf32>
    %96 = arith.maximumf %93, %95 : vector<8x128xf32>
    %cst_79 = arith.constant 0.000000e+00 : f32
    %97 = vector.shape_cast %2 : vector<1x128xi1> to vector<1x128xi1>
    %98 = vector.broadcast %97 : vector<1x128xi1> to vector<8x128xi1>
    %99 = vector.broadcast %cst_79 : f32 to vector<8x128xf32>
    %100 = arith.select %98, %96, %99 : vector<8x128xi1>, vector<8x128xf32>
    %c0_80 = arith.constant 0 : index
    %c128_81 = arith.constant 128 : index
    %101 = vector.load %arg8[%c0_80, %c128_81] : memref<8x256xf32, #tpu.memory_space<vmem>>, vector<8x128xf32>
    tpu.vector_store %arg8[%c0_80, %c128_81], %100 {strides = array<i32>} : memref<8x256xf32, #tpu.memory_space<vmem>>, vector<8x128xf32>,
    %c3_82 = arith.constant 3 : index
    %c0_83 = arith.constant 0 : index
    %c0_84 = arith.constant 0 : index
    %102 = vector.load %arg4[%c3_82, %c0_83, %c0_84] : memref<4x8x1xf32, #tpu.memory_space<vmem>>, vector<1x8x1xf32>
    %103 = vector.shape_cast %102 : vector<1x8x1xf32> to vector<8x1xf32>
    %c0_85 = arith.constant 0 : index
    %c124_86 = arith.constant 124 : index
    %104 = vector.load %arg8[%c0_85, %c124_86] : memref<8x256xf32, #tpu.memory_space<vmem>>, vector<8x128xf32>
    %c9 = arith.constant 9 : index
    %c0_87 = arith.constant 0 : index
    %c0_88 = arith.constant 0 : index
    %105 = vector.load %arg3[%c9, %c0_87, %c0_88] : memref<12x8x8xf32, #tpu.memory_space<vmem>>, vector<1x8x8xf32>
    %106 = vector.shape_cast %105 : vector<1x8x8xf32> to vector<8x8xf32>
    %cst_89 = arith.constant dense<0.000000e+00> : vector<8x128xf32>
    %107 = tpu.matmul %106, %104, %cst_89 {dimension_numbers = #tpu.dot_dimension_numbers<[1], [0], [0], [1], [0, 0, 1, 1], [], []>} : vector<8x8xf32>, vector<8x128xf32>, vector<8x128xf32> -> vector<8x128xf32>
    %c0_90 = arith.constant 0 : index
    %c126_91 = arith.constant 126 : index
    %108 = vector.load %arg8[%c0_90, %c126_91] : memref<8x256xf32, #tpu.memory_space<vmem>>, vector<8x128xf32>
    %c10 = arith.constant 10 : index
    %c0_92 = arith.constant 0 : index
    %c0_93 = arith.constant 0 : index
    %109 = vector.load %arg3[%c10, %c0_92, %c0_93] : memref<12x8x8xf32, #tpu.memory_space<vmem>>, vector<1x8x8xf32>
    %110 = vector.shape_cast %109 : vector<1x8x8xf32> to vector<8x8xf32>
    %cst_94 = arith.constant dense<0.000000e+00> : vector<8x128xf32>
    %111 = tpu.matmul %110, %108, %cst_94 {dimension_numbers = #tpu.dot_dimension_numbers<[1], [0], [0], [1], [0, 0, 1, 1], [], []>} : vector<8x8xf32>, vector<8x128xf32>, vector<8x128xf32> -> vector<8x128xf32>
    %112 = arith.addf %107, %111 : vector<8x128xf32>
    %c0_95 = arith.constant 0 : index
    %c128_96 = arith.constant 128 : index
    %113 = vector.load %arg8[%c0_95, %c128_96] : memref<8x256xf32, #tpu.memory_space<vmem>>, vector<8x128xf32>
    %c11 = arith.constant 11 : index
    %c0_97 = arith.constant 0 : index
    %c0_98 = arith.constant 0 : index
    %114 = vector.load %arg3[%c11, %c0_97, %c0_98] : memref<12x8x8xf32, #tpu.memory_space<vmem>>, vector<1x8x8xf32>
    %115 = vector.shape_cast %114 : vector<1x8x8xf32> to vector<8x8xf32>
    %cst_99 = arith.constant dense<0.000000e+00> : vector<8x128xf32>
    %116 = tpu.matmul %115, %113, %cst_99 {dimension_numbers = #tpu.dot_dimension_numbers<[1], [0], [0], [1], [0, 0, 1, 1], [], []>} : vector<8x8xf32>, vector<8x128xf32>, vector<8x128xf32> -> vector<8x128xf32>
    %117 = arith.addf %112, %116 : vector<8x128xf32>
    %118 = vector.broadcast %103 : vector<8x1xf32> to vector<8x128xf32>
    %119 = arith.addf %117, %118 : vector<8x128xf32>
    %cst_100 = arith.constant 0.00999999977 : f32
    %120 = vector.broadcast %cst_100 : f32 to vector<8x128xf32>
    %121 = arith.mulf %120, %119 : vector<8x128xf32>
    %122 = arith.maximumf %119, %121 : vector<8x128xf32>
    %123 = arith.addf %122, %70 : vector<8x128xf32>
    %cst_101 = arith.constant 0.00999999977 : f32
    %124 = vector.broadcast %cst_101 : f32 to vector<8x128xf32>
    %125 = arith.mulf %124, %123 : vector<8x128xf32>
    %126 = arith.maximumf %123, %125 : vector<8x128xf32>
    %c0_102 = arith.constant 0 : index
    %c0_103 = arith.constant 0 : index
    %c0_104 = arith.constant 0 : index
    %127 = vector.load %arg7[%c0_102, %c0_103, %c0_104] : memref<1x8x128xf32, #tpu.memory_space<vmem>>, vector<1x8x128xf32>
    %128 = vector.shape_cast %127 : vector<1x8x128xf32> to vector<8x128xf32>
    %129 = vector.shape_cast %126 : vector<8x128xf32> to vector<1x8x128xf32>
    tpu.vector_store %arg7[%c0_102, %c0_103, %c0_104], %129 {strides = array<i32>} : memref<1x8x128xf32, #tpu.memory_space<vmem>>, vector<1x8x128xf32>,
    return
  }
  func.func @transform_0(%arg0: i32) -> (i32, i32) {
    %c0_i32 = arith.constant 0 : i32
    %c0_i32_0 = arith.constant 0 : i32
    %c0_i32_1 = arith.constant 0 : i32
    return %c0_i32, %c0_i32_0 : i32, i32
  }
  func.func @transform_1(%arg0: i32) -> (i32, i32, i32) {
    %c0_i32 = arith.constant 0 : i32
    %c0_i32_0 = arith.constant 0 : i32
    %c0_i32_1 = arith.constant 0 : i32
    return %arg0, %c0_i32, %c0_i32_0 : i32, i32, i32
  }
  func.func @transform_2(%arg0: i32) -> (i32, i32, i32) {
    %c0_i32 = arith.constant 0 : i32
    %c0_i32_0 = arith.constant 0 : i32
    %c0_i32_1 = arith.constant 0 : i32
    %c0_i32_2 = arith.constant 0 : i32
    return %c0_i32, %c0_i32_0, %c0_i32_1 : i32, i32, i32
  }
  func.func @transform_3(%arg0: i32) -> (i32, i32, i32) {
    %c0_i32 = arith.constant 0 : i32
    %c0_i32_0 = arith.constant 0 : i32
    %c0_i32_1 = arith.constant 0 : i32
    %c0_i32_2 = arith.constant 0 : i32
    return %c0_i32, %c0_i32_0, %c0_i32_1 : i32, i32, i32
  }
  func.func @transform_4(%arg0: i32) -> (i32, i32, i32) {
    %c0_i32 = arith.constant 0 : i32
    %c0_i32_0 = arith.constant 0 : i32
    %c0_i32_1 = arith.constant 0 : i32
    %c0_i32_2 = arith.constant 0 : i32
    return %c0_i32, %c0_i32_0, %c0_i32_1 : i32, i32, i32
  }
  func.func @transform_5(%arg0: i32) -> (i32, i32, i32) {
    %c0_i32 = arith.constant 0 : i32
    %c0_i32_0 = arith.constant 0 : i32
    %c0_i32_1 = arith.constant 0 : i32
    %c0_i32_2 = arith.constant 0 : i32
    return %c0_i32, %c0_i32_0, %c0_i32_1 : i32, i32, i32
  }
  func.func @transform_6(%arg0: i32) -> (i32, i32, i32) {
    %c0_i32 = arith.constant 0 : i32
    %c0_i32_0 = arith.constant 0 : i32
    %c0_i32_1 = arith.constant 0 : i32
    return %arg0, %c0_i32, %c0_i32_0 : i32, i32, i32
  }
}

</mosaic_0001>

<llo_original>
// kernel: tpu_custom_call.1
$region0: #{tpu_custom_call.1}
  #allocation0 [shape = 'u32[]', space=smem, size = 0x4, offset = 0x4, fixed_abs, tag = 'smem constant byte address 0x4 - core index']
  #allocation1 [shape = 'u32[144,128]{1,0:T(1,128)}', space=vmem, size = 0x12000, scoped, tag = 'internal scratch']
  #allocation2 [shape = 'f32[8,256]{1,0:T(8,128)}', space=vmem, size = 0x2000, scoped, tag = 'scratch operand']
  %s0 = inlined_call_operand.vmem [shape: s32[1,128], index: 0, kind: input, shape index: {}]
  %s1 = inlined_call_operand.vmem [shape: f32[1,8,128], index: 1, kind: input, shape index: {}]
  %s2 = inlined_call_operand.vmem [shape: f32[12,8,8], index: 2, kind: input, shape index: {}]
  %s3 = inlined_call_operand.vmem [shape: f32[4,8,1], index: 3, kind: input, shape index: {}]
  %s4 = inlined_call_operand.vmem [shape: f32[2,8,8], index: 4, kind: input, shape index: {}]
  %s5 = inlined_call_operand.vmem [shape: f32[2,8,1], index: 5, kind: input, shape index: {}]
  %s6 = inlined_call_operand.hbm [shape: f32[1,8,128], index: 6, kind: output, shape index: {}]
  %s7 = sld [smem:[#allocation0]]
  $region34: #{tpu_custom_call.1} parent=0
    _
  %s9 = ssub.s32 1, %s7
  %s10 = scalar_select 0, %s9, %s7
  $region1: #{tpu_custom_call.1} parent=0
    #allocation3 [shape = 'u8[4096]{0}', space=vmem, size = 0x1000, scoped, tag = 'output window, operand 0, single buffered']
    #allocation4 [shape = 's32[1]{0}', space=sflag, size = 0x4, scoped, tag = 'scoped memory for tpu_custom_call.1']
    %11 = vsyncpa [#allocation4], 0
    // Predicated region
    $region2: #{tpu_custom_call.1} parent=1 // pred_check
      _
    $region3: #{tpu_custom_call.1} parent=1 // pred_check_branch
      %13 = sbr.rel (0) target = $region5
    $region4: #{tpu_custom_call.1} parent=1 // pred_region
      _
    $region5: #{tpu_custom_call.1} parent=1 // pred_fallthru
      _
    // Predicated region
    $region6: #{tpu_custom_call.1} parent=1 // pred_check
      _
    $region7: #{tpu_custom_call.1} parent=1 // pred_check_branch
      %15 = sbr.rel (0) target = $region9
    $region8: #{tpu_custom_call.1} parent=1 // pred_region
      _
    $region9: #{tpu_custom_call.1} parent=1 // pred_fallthru
      _
    // Predicated region
    $region10: #{tpu_custom_call.1} parent=1 // pred_check
      _
    $region11: #{tpu_custom_call.1} parent=1 // pred_check_branch
      %17 = sbr.rel (0) target = $region13
    $region12: #{tpu_custom_call.1} parent=1 // pred_region
      _
    $region13: #{tpu_custom_call.1} parent=1 // pred_fallthru
      _
    // Predicated region
    $region14: #{tpu_custom_call.1} parent=1 // pred_check
      _
    $region15: #{tpu_custom_call.1} parent=1 // pred_check_branch
      %19 = sbr.rel (0) target = $region17
    $region16: #{tpu_custom_call.1} parent=1 // pred_region
      _
    $region17: #{tpu_custom_call.1} parent=1 // pred_fallthru
      _
    // Predicated region
    $region18: #{tpu_custom_call.1} parent=1 // pred_check
      _
    $region19: #{tpu_custom_call.1} parent=1 // pred_check_branch
      %21 = sbr.rel (0) target = $region21
    $region20: #{tpu_custom_call.1} parent=1 // pred_region
      _
    $region21: #{tpu_custom_call.1} parent=1 // pred_fallthru
      _
    // Predicated region
    $region22: #{tpu_custom_call.1} parent=1 // pred_check
      _
    $region23: #{tpu_custom_call.1} parent=1 // pred_check_branch
      %23 = sbr.rel (0) target = $region25
    $region24: #{tpu_custom_call.1} parent=1 // pred_region
      _
    $region25: #{tpu_custom_call.1} parent=1 // pred_fallthru
      _
    %v24 = vld [vmem:[%s0] sm:$0x1]
    %vm25 = vcmp.ne.s32.totalorder %v24, 0
    %v26 = vld [vmem:[%s1] sm:$0xff]
    %27 = vst [vmem:[#allocation2] sm:$0xff] 0.0
    %v28 = vsel %vm25, 1, 0
    %v29 = vlaneseq
    %v30 = vshrl.u32 %v29, 7
    %v31 = vsub.s32 0, %v30
    %v32 = vrot.slane %v28, %v31
    %vm33 = vcmp.eq.s32.totalorder %v32, 1
    %v34 = vsel %vm33, %v26, 0.0
    %35 = vst [vmem:[#allocation2 + $0x8] sm:$0xff] %v34
    %v36 = vld [vmem:[%s3] sm:$0xff]
    %v37 = vld [vmem:[#allocation2] sm:$0xff]
    %v38 = vld [vmem:[#allocation2 + $0x8] sm:$0xff]
    %v39 = vld [vmem:[%s2] sm:$0xff]
    %s40 = scalar_lea.vmem %s2, 8
    %v41 = vld [vmem:[%s40] sm:$0xff]
    %44 = vrot.lane.b32.xlu0 %v37, 1
    %v45 = vpop.permute.xlu0 %44
    %46 = vrot.lane.b32.xlu0 %v38, 1
    %v47 = vpop.permute.xlu0 %46
    %vm48 = vcmask 7168
    %v49 = vsel %vm48, %v45, %v47
    %vm51 = vcmask 64512
    %v53 = vsel %vm51, %v41, 0
    %55 = vmatprep.subr.mxu0 0.0
    %56 = vmatpush1.msra.mxu0 %v49
    %57 = vmatprep.subr.mxu0 0.0
    %58 = vmatpush1.msra.mxu0 0.0
    %59 = vmatprep.subr.mxu0 0.0
    %60 = vmatpush1.msra.mxu0 0.0
    %61 = vmatprep.subr.mxu0 0.0
    %62 = vmatpush1.msra.mxu0 0.0
    %63 = vmatprep.subr.mxu0 0.0
    %64 = vmatpush1.msra.mxu0 0.0
    %65 = vmatprep.subr.mxu0 0.0
    %66 = vmatpush1.msra.mxu0 0.0
    %67 = vmatprep.subr.mxu0 0.0
    %68 = vmatpush1.msra.mxu0 0.0
    %69 = vmatprep.subr.mxu0 0.0
    %70 = vmatpush1.msra.mxu0 0.0
    %71 = vmatprep.subr.mxu0 0.0
    %72 = vmatpush1.msra.mxu0 0.0
    %73 = vmatprep.subr.mxu0 0.0
    %74 = vmatpush1.msra.mxu0 0.0
    %75 = vmatprep.subr.mxu0 0.0
    %76 = vmatpush1.msra.mxu0 0.0
    %77 = vmatprep.subr.mxu0 0.0
    %78 = vmatpush1.msra.mxu0 0.0
    %79 = vmatprep.subr.mxu0 0.0
    %80 = vmatpush1.msra.mxu0 0.0
    %81 = vmatprep.subr.mxu0 0.0
    %82 = vmatpush1.msra.mxu0 0.0
    %83 = vmatprep.subr.mxu0 0.0
    %84 = vmatpush1.msra.mxu0 0.0
    %85 = vmatprep.subr.mxu0 0.0
    %86 = vmatpush1.msra.mxu0 0.0
    %87 = vmatprep.subr.mxu0 0.0
    %88 = vmatpush1.msra.mxu0 0.0
    %89 = vmatprep.subr.mxu0 0.0
    %90 = vmatpush1.msra.mxu0 0.0
    %91 = vmatprep.subr.mxu0 0.0
    %92 = vmatpush1.msra.mxu0 0.0
    %93 = vmatprep.subr.mxu0 0.0
    %94 = vmatpush1.msra.mxu0 0.0
    %95 = vmatprep.subr.mxu0 0.0
    %96 = vmatpush1.msra.mxu0 0.0
    %97 = vmatprep.subr.mxu0 0.0
    %98 = vmatpush1.msra.mxu0 0.0
    %99 = vmatprep.subr.mxu0 0.0
    %100 = vmatpush1.msra.mxu0 0.0
    %101 = vmatprep.subr.mxu0 0.0
    %102 = vmatpush1.msra.mxu0 0.0
    %103 = vmatprep.subr.mxu0 0.0
    %104 = vmatpush1.msra.mxu0 0.0
    %105 = vmatprep.subr.mxu0 0.0
    %106 = vmatpush1.msra.mxu0 0.0
    %107 = vmatprep.subr.mxu0 0.0
    %108 = vmatpush1.msra.mxu0 0.0
    %109 = vmatprep.subr.mxu0 0.0
    %110 = vmatpush1.msra.mxu0 0.0
    %111 = vmatprep.subr.mxu0 0.0
    %112 = vmatpush1.msra.mxu0 0.0
    %113 = vmatprep.subr.mxu0 0.0
    %114 = vmatpush1.msra.mxu0 0.0
    %115 = vmatprep.subr.mxu0 0.0
    %116 = vmatpush1.msra.mxu0 0.0
    %117 = vmatprep.subr.mxu0 0.0
    %118 = vmatpush1.msra.mxu0 0.0
    %119 = vmatprep.mubr.f32.mxu0 0.0
    %120 = vmatmul.mubr.f32.gmra.mrb[0].mxu0 %v53
    %v121 = vpop.f32.mrb[0].mxu0
    %v122 = vadd.f32 0.0, %v121
    %v123 = vpop.f32.mrb[0].mxu0
    %124 = vdwg.mxu0
    %125 = vrot.lane.b32.xlu0 %v37, 2
    %v126 = vpop.permute.xlu0 %125
    %127 = vrot.lane.b32.xlu0 %v38, 2
    %v128 = vpop.permute.xlu0 %127
    %vm129 = vcmask 15360
    %v130 = vsel %vm129, %v126, %v128
    %v133 = vsel %vm51, %v39, 0
    %135 = vmatprep.subr.mxu0 0.0
    %136 = vmatpush1.msra.mxu0 %v130
    %137 = vmatprep.subr.mxu0 0.0
    %138 = vmatpush1.msra.mxu0 0.0
    %139 = vmatprep.subr.mxu0 0.0
    %140 = vmatpush1.msra.mxu0 0.0
    %141 = vmatprep.subr.mxu0 0.0
    %142 = vmatpush1.msra.mxu0 0.0
    %143 = vmatprep.subr.mxu0 0.0
    %144 = vmatpush1.msra.mxu0 0.0
    %145 = vmatprep.subr.mxu0 0.0
    %146 = vmatpush1.msra.mxu0 0.0
    %147 = vmatprep.subr.mxu0 0.0
    %148 = vmatpush1.msra.mxu0 0.0
    %149 = vmatprep.subr.mxu0 0.0
    %150 = vmatpush1.msra.mxu0 0.0
    %151 = vmatprep.subr.mxu0 0.0
    %152 = vmatpush1.msra.mxu0 0.0
    %153 = vmatprep.subr.mxu0 0.0
    %154 = vmatpush1.msra.mxu0 0.0
    %155 = vmatprep.subr.mxu0 0.0
    %156 = vmatpush1.msra.mxu0 0.0
    %157 = vmatprep.subr.mxu0 0.0
    %158 = vmatpush1.msra.mxu0 0.0
    %159 = vmatprep.subr.mxu0 0.0
    %160 = vmatpush1.msra.mxu0 0.0
    %161 = vmatprep.subr.mxu0 0.0
    %162 = vmatpush1.msra.mxu0 0.0
    %163 = vmatprep.subr.mxu0 0.0
    %164 = vmatpush1.msra.mxu0 0.0
    %165 = vmatprep.subr.mxu0 0.0
    %166 = vmatpush1.msra.mxu0 0.0
    %167 = vmatprep.subr.mxu0 0.0
    %168 = vmatpush1.msra.mxu0 0.0
    %169 = vmatprep.subr.mxu0 0.0
    %170 = vmatpush1.msra.mxu0 0.0
    %171 = vmatprep.subr.mxu0 0.0
    %172 = vmatpush1.msra.mxu0 0.0
    %173 = vmatprep.subr.mxu0 0.0
    %174 = vmatpush1.msra.mxu0 0.0
    %175 = vmatprep.subr.mxu0 0.0
    %176 = vmatpush1.msra.mxu0 0.0
    %177 = vmatprep.subr.mxu0 0.0
    %178 = vmatpush1.msra.mxu0 0.0
    %179 = vmatprep.subr.mxu0 0.0
    %180 = vmatpush1.msra.mxu0 0.0
    %181 = vmatprep.subr.mxu0 0.0
    %182 = vmatpush1.msra.mxu0 0.0
    %183 = vmatprep.subr.mxu0 0.0
    %184 = vmatpush1.msra.mxu0 0.0
    %185 = vmatprep.subr.mxu0 0.0
    %186 = vmatpush1.msra.mxu0 0.0
    %187 = vmatprep.subr.mxu0 0.0
    %188 = vmatpush1.msra.mxu0 0.0
    %189 = vmatprep.subr.mxu0 0.0
    %190 = vmatpush1.msra.mxu0 0.0
    %191 = vmatprep.subr.mxu0 0.0
    %192 = vmatpush1.msra.mxu0 0.0
    %193 = vmatprep.subr.mxu0 0.0
    %194 = vmatpush1.msra.mxu0 0.0
    %195 = vmatprep.subr.mxu0 0.0
    %196 = vmatpush1.msra.mxu0 0.0
    %197 = vmatprep.subr.mxu0 0.0
    %198 = vmatpush1.msra.mxu0 0.0
    %199 = vmatprep.mubr.f32.mxu0 0.0
    %200 = vmatmul.mubr.f32.gmra.mrb[0].mxu0 %v133
    %v201 = vpop.f32.mrb[0].mxu0
    %v202 = vadd.f32 %v122, %v201
    %v203 = vpop.f32.mrb[0].mxu0
    %204 = vdwg.mxu0
    %s205 = scalar_lea.vmem %s2, 16
    %v206 = vld [vmem:[%s205] sm:$0xff]
    %v208 = vsel %vm51, %v206, 0
    %210 = vmatprep.subr.mxu0 0.0
    %211 = vmatpush1.msra.mxu0 %v38
    %212 = vmatprep.subr.mxu0 0.0
    %213 = vmatpush1.msra.mxu0 0.0
    %214 = vmatprep.subr.mxu0 0.0
    %215 = vmatpush1.msra.mxu0 0.0
    %216 = vmatprep.subr.mxu0 0.0
    %217 = vmatpush1.msra.mxu0 0.0
    %218 = vmatprep.subr.mxu0 0.0
    %219 = vmatpush1.msra.mxu0 0.0
    %220 = vmatprep.subr.mxu0 0.0
    %221 = vmatpush1.msra.mxu0 0.0
    %222 = vmatprep.subr.mxu0 0.0
    %223 = vmatpush1.msra.mxu0 0.0
    %224 = vmatprep.subr.mxu0 0.0
    %225 = vmatpush1.msra.mxu0 0.0
    %226 = vmatprep.subr.mxu0 0.0
    %227 = vmatpush1.msra.mxu0 0.0
    %228 = vmatprep.subr.mxu0 0.0
    %229 = vmatpush1.msra.mxu0 0.0
    %230 = vmatprep.subr.mxu0 0.0
    %231 = vmatpush1.msra.mxu0 0.0
    %232 = vmatprep.subr.mxu0 0.0
    %233 = vmatpush1.msra.mxu0 0.0
    %234 = vmatprep.subr.mxu0 0.0
    %235 = vmatpush1.msra.mxu0 0.0
    %236 = vmatprep.subr.mxu0 0.0
    %237 = vmatpush1.msra.mxu0 0.0
    %238 = vmatprep.subr.mxu0 0.0
    %239 = vmatpush1.msra.mxu0 0.0
    %240 = vmatprep.subr.mxu0 0.0
    %241 = vmatpush1.msra.mxu0 0.0
    %242 = vmatprep.subr.mxu0 0.0
    %243 = vmatpush1.msra.mxu0 0.0
    %244 = vmatprep.subr.mxu0 0.0
    %245 = vmatpush1.msra.mxu0 0.0
    %246 = vmatprep.subr.mxu0 0.0
    %247 = vmatpush1.msra.mxu0 0.0
    %248 = vmatprep.subr.mxu0 0.0
    %249 = vmatpush1.msra.mxu0 0.0
    %250 = vmatprep.subr.mxu0 0.0
    %251 = vmatpush1.msra.mxu0 0.0
    %252 = vmatprep.subr.mxu0 0.0
    %253 = vmatpush1.msra.mxu0 0.0
    %254 = vmatprep.subr.mxu0 0.0
    %255 = vmatpush1.msra.mxu0 0.0
    %256 = vmatprep.subr.mxu0 0.0
    %257 = vmatpush1.msra.mxu0 0.0
    %258 = vmatprep.subr.mxu0 0.0
    %259 = vmatpush1.msra.mxu0 0.0
    %260 = vmatprep.subr.mxu0 0.0
    %261 = vmatpush1.msra.mxu0 0.0
    %262 = vmatprep.subr.mxu0 0.0
    %263 = vmatpush1.msra.mxu0 0.0
    %264 = vmatprep.subr.mxu0 0.0
    %265 = vmatpush1.msra.mxu0 0.0
    %266 = vmatprep.subr.mxu0 0.0
    %267 = vmatpush1.msra.mxu0 0.0
    %268 = vmatprep.subr.mxu0 0.0
    %269 = vmatpush1.msra.mxu0 0.0
    %270 = vmatprep.subr.mxu0 0.0
    %271 = vmatpush1.msra.mxu0 0.0
    %272 = vmatprep.subr.mxu0 0.0
    %273 = vmatpush1.msra.mxu0 0.0
    %274 = vmatprep.mubr.f32.mxu0 0.0
    %275 = vmatmul.mubr.f32.gmra.mrb[0].mxu0 %v208
    %v276 = vpop.f32.mrb[0].mxu0
    %v277 = vadd.f32 0.0, %v276
    %v278 = vpop.f32.mrb[0].mxu0
    %279 = vdwg.mxu0
    %v280 = vadd.f32 %v202, %v277
    %282 = vset.pattern.permute.xlu0 0
    %283 = vperm.xlu0 %282, %v36
    %v284 = vpop.permute.xlu0 %283
    %v286 = vadd.f32 %v280, %v284
    %v287 = vld [vmem:[%s4] sm:$0xff]
    %v288 = vld [vmem:[%s5] sm:$0xff]
    %290 = vset.pattern.permute.xlu0 0
    %291 = vperm.xlu0 %290, %v288
    %v292 = vpop.permute.xlu0 %291
    %v295 = vsel %vm51, %v287, 0
    %297 = vmatprep.subr.mxu0 0.0
    %298 = vmatpush1.msra.mxu0 %v38
    %299 = vmatprep.subr.mxu0 0.0
    %300 = vmatpush1.msra.mxu0 0.0
    %301 = vmatprep.subr.mxu0 0.0
    %302 = vmatpush1.msra.mxu0 0.0
    %303 = vmatprep.subr.mxu0 0.0
    %304 = vmatpush1.msra.mxu0 0.0
    %305 = vmatprep.subr.mxu0 0.0
    %306 = vmatpush1.msra.mxu0 0.0
    %307 = vmatprep.subr.mxu0 0.0
    %308 = vmatpush1.msra.mxu0 0.0
    %309 = vmatprep.subr.mxu0 0.0
    %310 = vmatpush1.msra.mxu0 0.0
    %311 = vmatprep.subr.mxu0 0.0
    %312 = vmatpush1.msra.mxu0 0.0
    %313 = vmatprep.subr.mxu0 0.0
    %314 = vmatpush1.msra.mxu0 0.0
    %315 = vmatprep.subr.mxu0 0.0
    %316 = vmatpush1.msra.mxu0 0.0
    %317 = vmatprep.subr.mxu0 0.0
    %318 = vmatpush1.msra.mxu0 0.0
    %319 = vmatprep.subr.mxu0 0.0
    %320 = vmatpush1.msra.mxu0 0.0
    %321 = vmatprep.subr.mxu0 0.0
    %322 = vmatpush1.msra.mxu0 0.0
    %323 = vmatprep.subr.mxu0 0.0
    %324 = vmatpush1.msra.mxu0 0.0
    %325 = vmatprep.subr.mxu0 0.0
    %326 = vmatpush1.msra.mxu0 0.0
    %327 = vmatprep.subr.mxu0 0.0
    %328 = vmatpush1.msra.mxu0 0.0
    %329 = vmatprep.subr.mxu0 0.0
    %330 = vmatpush1.msra.mxu0 0.0
    %331 = vmatprep.subr.mxu0 0.0
    %332 = vmatpush1.msra.mxu0 0.0
    %333 = vmatprep.subr.mxu0 0.0
    %334 = vmatpush1.msra.mxu0 0.0
    %335 = vmatprep.subr.mxu0 0.0
    %336 = vmatpush1.msra.mxu0 0.0
    %337 = vmatprep.subr.mxu0 0.0
    %338 = vmatpush1.msra.mxu0 0.0
    %339 = vmatprep.subr.mxu0 0.0
    %340 = vmatpush1.msra.mxu0 0.0
    %341 = vmatprep.subr.mxu0 0.0
    %342 = vmatpush1.msra.mxu0 0.0
    %343 = vmatprep.subr.mxu0 0.0
    %344 = vmatpush1.msra.mxu0 0.0
    %345 = vmatprep.subr.mxu0 0.0
    %346 = vmatpush1.msra.mxu0 0.0
    %347 = vmatprep.subr.mxu0 0.0
    %348 = vmatpush1.msra.mxu0 0.0
    %349 = vmatprep.subr.mxu0 0.0
    %350 = vmatpush1.msra.mxu0 0.0
    %351 = vmatprep.subr.mxu0 0.0
    %352 = vmatpush1.msra.mxu0 0.0
    %353 = vmatprep.subr.mxu0 0.0
    %354 = vmatpush1.msra.mxu0 0.0
    %355 = vmatprep.subr.mxu0 0.0
    %356 = vmatpush1.msra.mxu0 0.0
    %357 = vmatprep.subr.mxu0 0.0
    %358 = vmatpush1.msra.mxu0 0.0
    %359 = vmatprep.subr.mxu0 0.0
    %360 = vmatpush1.msra.mxu0 0.0
    %361 = vmatprep.mubr.f32.mxu0 0.0
    %362 = vmatmul.mubr.f32.gmra.mrb[0].mxu0 %v295
    %v363 = vpop.f32.mrb[0].mxu0
    %v364 = vadd.f32 %v292, %v363
    %v365 = vpop.f32.mrb[0].mxu0
    %366 = vdwg.mxu0
    %v367 = vmul.f32 %v286, 0.01
    %v368 = vmax.f32 %v286, %v367
    %v369 = vsel %vm33, %v368, 0.0
    %370 = vst [vmem:[#allocation2 + $0x8] sm:$0xff] %v369
    %s371 = scalar_lea.vmem %s3, 8
    %v372 = vld [vmem:[%s371] sm:$0xff]
    %v373 = vld [vmem:[#allocation2] sm:$0xff]
    %v374 = vld [vmem:[#allocation2 + $0x8] sm:$0xff]
    %s375 = scalar_lea.vmem %s2, 24
    %v376 = vld [vmem:[%s375] sm:$0xff]
    %s377 = scalar_lea.vmem %s2, 32
    %v378 = vld [vmem:[%s377] sm:$0xff]
    %381 = vrot.lane.b32.xlu0 %v373, 1
    %v382 = vpop.permute.xlu0 %381
    %383 = vrot.lane.b32.xlu0 %v374, 1
    %v384 = vpop.permute.xlu0 %383
    %v385 = vsel %vm48, %v382, %v384
    %v388 = vsel %vm51, %v378, 0
    %390 = vmatprep.subr.mxu0 0.0
    %391 = vmatpush1.msra.mxu0 %v385
    %392 = vmatprep.subr.mxu0 0.0
    %393 = vmatpush1.msra.mxu0 0.0
    %394 = vmatprep.subr.mxu0 0.0
    %395 = vmatpush1.msra.mxu0 0.0
    %396 = vmatprep.subr.mxu0 0.0
    %397 = vmatpush1.msra.mxu0 0.0
    %398 = vmatprep.subr.mxu0 0.0
    %399 = vmatpush1.msra.mxu0 0.0
    %400 = vmatprep.subr.mxu0 0.0
    %401 = vmatpush1.msra.mxu0 0.0
    %402 = vmatprep.subr.mxu0 0.0
    %403 = vmatpush1.msra.mxu0 0.0
    %404 = vmatprep.subr.mxu0 0.0
    %405 = vmatpush1.msra.mxu0 0.0
    %406 = vmatprep.subr.mxu0 0.0
    %407 = vmatpush1.msra.mxu0 0.0
    %408 = vmatprep.subr.mxu0 0.0
    %409 = vmatpush1.msra.mxu0 0.0
    %410 = vmatprep.subr.mxu0 0.0
    %411 = vmatpush1.msra.mxu0 0.0
    %412 = vmatprep.subr.mxu0 0.0
    %413 = vmatpush1.msra.mxu0 0.0
    %414 = vmatprep.subr.mxu0 0.0
    %415 = vmatpush1.msra.mxu0 0.0
    %416 = vmatprep.subr.mxu0 0.0
    %417 = vmatpush1.msra.mxu0 0.0
    %418 = vmatprep.subr.mxu0 0.0
    %419 = vmatpush1.msra.mxu0 0.0
    %420 = vmatprep.subr.mxu0 0.0
    %421 = vmatpush1.msra.mxu0 0.0
    %422 = vmatprep.subr.mxu0 0.0
    %423 = vmatpush1.msra.mxu0 0.0
    %424 = vmatprep.subr.mxu0 0.0
    %425 = vmatpush1.msra.mxu0 0.0
    %426 = vmatprep.subr.mxu0 0.0
    %427 = vmatpush1.msra.mxu0 0.0
    %428 = vmatprep.subr.mxu0 0.0
    %429 = vmatpush1.msra.mxu0 0.0
    %430 = vmatprep.subr.mxu0 0.0
    %431 = vmatpush1.msra.mxu0 0.0
    %432 = vmatprep.subr.mxu0 0.0
    %433 = vmatpush1.msra.mxu0 0.0
    %434 = vmatprep.subr.mxu0 0.0
    %435 = vmatpush1.msra.mxu0 0.0
    %436 = vmatprep.subr.mxu0 0.0
    %437 = vmatpush1.msra.mxu0 0.0
    %438 = vmatprep.subr.mxu0 0.0
    %439 = vmatpush1.msra.mxu0 0.0
    %440 = vmatprep.subr.mxu0 0.0
    %441 = vmatpush1.msra.mxu0 0.0
    %442 = vmatprep.subr.mxu0 0.0
    %443 = vmatpush1.msra.mxu0 0.0
    %444 = vmatprep.subr.mxu0 0.0
    %445 = vmatpush1.msra.mxu0 0.0
    %446 = vmatprep.subr.mxu0 0.0
    %447 = vmatpush1.msra.mxu0 0.0
    %448 = vmatprep.subr.mxu0 0.0
    %449 = vmatpush1.msra.mxu0 0.0
    %450 = vmatprep.subr.mxu0 0.0
    %451 = vmatpush1.msra.mxu0 0.0
    %452 = vmatprep.subr.mxu0 0.0
    %453 = vmatpush1.msra.mxu0 0.0
    %454 = vmatprep.mubr.f32.mxu0 0.0
    %455 = vmatmul.mubr.f32.gmra.mrb[0].mxu0 %v388
    %v456 = vpop.f32.mrb[0].mxu0
    %v457 = vadd.f32 0.0, %v456
    %v458 = vpop.f32.mrb[0].mxu0
    %459 = vdwg.mxu0
    %460 = vrot.lane.b32.xlu0 %v373, 2
    %v461 = vpop.permute.xlu0 %460
    %462 = vrot.lane.b32.xlu0 %v374, 2
    %v463 = vpop.permute.xlu0 %462
    %v464 = vsel %vm129, %v461, %v463
    %v467 = vsel %vm51, %v376, 0
    %469 = vmatprep.subr.mxu0 0.0
    %470 = vmatpush1.msra.mxu0 %v464
    %471 = vmatprep.subr.mxu0 0.0
    %472 = vmatpush1.msra.mxu0 0.0
    %473 = vmatprep.subr.mxu0 0.0
    %474 = vmatpush1.msra.mxu0 0.0
    %475 = vmatprep.subr.mxu0 0.0
    %476 = vmatpush1.msra.mxu0 0.0
    %477 = vmatprep.subr.mxu0 0.0
    %478 = vmatpush1.msra.mxu0 0.0
    %479 = vmatprep.subr.mxu0 0.0
    %480 = vmatpush1.msra.mxu0 0.0
    %481 = vmatprep.subr.mxu0 0.0
    %482 = vmatpush1.msra.mxu0 0.0
    %483 = vmatprep.subr.mxu0 0.0
    %484 = vmatpush1.msra.mxu0 0.0
    %485 = vmatprep.subr.mxu0 0.0
    %486 = vmatpush1.msra.mxu0 0.0
    %487 = vmatprep.subr.mxu0 0.0
    %488 = vmatpush1.msra.mxu0 0.0
    %489 = vmatprep.subr.mxu0 0.0
    %490 = vmatpush1.msra.mxu0 0.0
    %491 = vmatprep.subr.mxu0 0.0
    %492 = vmatpush1.msra.mxu0 0.0
    %493 = vmatprep.subr.mxu0 0.0
    %494 = vmatpush1.msra.mxu0 0.0
    %495 = vmatprep.subr.mxu0 0.0
    %496 = vmatpush1.msra.mxu0 0.0
    %497 = vmatprep.subr.mxu0 0.0
    %498 = vmatpush1.msra.mxu0 0.0
    %499 = vmatprep.subr.mxu0 0.0
    %500 = vmatpush1.msra.mxu0 0.0
    %501 = vmatprep.subr.mxu0 0.0
    %502 = vmatpush1.msra.mxu0 0.0
    %503 = vmatprep.subr.mxu0 0.0
    %504 = vmatpush1.msra.mxu0 0.0
    %505 = vmatprep.subr.mxu0 0.0
    %506 = vmatpush1.msra.mxu0 0.0
    %507 = vmatprep.subr.mxu0 0.0
    %508 = vmatpush1.msra.mxu0 0.0
    %509 = vmatprep.subr.mxu0 0.0
    %510 = vmatpush1.msra.mxu0 0.0
    %511 = vmatprep.subr.mxu0 0.0
    %512 = vmatpush1.msra.mxu0 0.0
    %513 = vmatprep.subr.mxu0 0.0
    %514 = vmatpush1.msra.mxu0 0.0
    %515 = vmatprep.subr.mxu0 0.0
    %516 = vmatpush1.msra.mxu0 0.0
    %517 = vmatprep.subr.mxu0 0.0
    %518 = vmatpush1.msra.mxu0 0.0
    %519 = vmatprep.subr.mxu0 0.0
    %520 = vmatpush1.msra.mxu0 0.0
    %521 = vmatprep.subr.mxu0 0.0
    %522 = vmatpush1.msra.mxu0 0.0
    %523 = vmatprep.subr.mxu0 0.0
    %524 = vmatpush1.msra.mxu0 0.0
    %525 = vmatprep.subr.mxu0 0.0
    %526 = vmatpush1.msra.mxu0 0.0
    %527 = vmatprep.subr.mxu0 0.0
    %528 = vmatpush1.msra.mxu0 0.0
    %529 = vmatprep.subr.mxu0 0.0
    %530 = vmatpush1.msra.mxu0 0.0
    %531 = vmatprep.subr.mxu0 0.0
    %532 = vmatpush1.msra.mxu0 0.0
    %533 = vmatprep.mubr.f32.mxu0 0.0
    %534 = vmatmul.mubr.f32.gmra.mrb[0].mxu0 %v467
    %v535 = vpop.f32.mrb[0].mxu0
    %v536 = vadd.f32 %v457, %v535
    %v537 = vpop.f32.mrb[0].mxu0
    %538 = vdwg.mxu0
    %s539 = scalar_lea.vmem %s2, 40
    %v540 = vld [vmem:[%s539] sm:$0xff]
    %v542 = vsel %vm51, %v540, 0
    %544 = vmatprep.subr.mxu0 0.0
    %545 = vmatpush1.msra.mxu0 %v374
    %546 = vmatprep.subr.mxu0 0.0
    %547 = vmatpush1.msra.mxu0 0.0
    %548 = vmatprep.subr.mxu0 0.0
    %549 = vmatpush1.msra.mxu0 0.0
    %550 = vmatprep.subr.mxu0 0.0
    %551 = vmatpush1.msra.mxu0 0.0
    %552 = vmatprep.subr.mxu0 0.0
    %553 = vmatpush1.msra.mxu0 0.0
    %554 = vmatprep.subr.mxu0 0.0
    %555 = vmatpush1.msra.mxu0 0.0
    %556 = vmatprep.subr.mxu0 0.0
    %557 = vmatpush1.msra.mxu0 0.0
    %558 = vmatprep.subr.mxu0 0.0
    %559 = vmatpush1.msra.mxu0 0.0
    %560 = vmatprep.subr.mxu0 0.0
    %561 = vmatpush1.msra.mxu0 0.0
    %562 = vmatprep.subr.mxu0 0.0
    %563 = vmatpush1.msra.mxu0 0.0
    %564 = vmatprep.subr.mxu0 0.0
    %565 = vmatpush1.msra.mxu0 0.0
    %566 = vmatprep.subr.mxu0 0.0
    %567 = vmatpush1.msra.mxu0 0.0
    %568 = vmatprep.subr.mxu0 0.0
    %569 = vmatpush1.msra.mxu0 0.0
    %570 = vmatprep.subr.mxu0 0.0
    %571 = vmatpush1.msra.mxu0 0.0
    %572 = vmatprep.subr.mxu0 0.0
    %573 = vmatpush1.msra.mxu0 0.0
    %574 = vmatprep.subr.mxu0 0.0
    %575 = vmatpush1.msra.mxu0 0.0
    %576 = vmatprep.subr.mxu0 0.0
    %577 = vmatpush1.msra.mxu0 0.0
    %578 = vmatprep.subr.mxu0 0.0
    %579 = vmatpush1.msra.mxu0 0.0
    %580 = vmatprep.subr.mxu0 0.0
    %581 = vmatpush1.msra.mxu0 0.0
    %582 = vmatprep.subr.mxu0 0.0
    %583 = vmatpush1.msra.mxu0 0.0
    %584 = vmatprep.subr.mxu0 0.0
    %585 = vmatpush1.msra.mxu0 0.0
    %586 = vmatprep.subr.mxu0 0.0
    %587 = vmatpush1.msra.mxu0 0.0
    %588 = vmatprep.subr.mxu0 0.0
    %589 = vmatpush1.msra.mxu0 0.0
    %590 = vmatprep.subr.mxu0 0.0
    %591 = vmatpush1.msra.mxu0 0.0
    %592 = vmatprep.subr.mxu0 0.0
    %593 = vmatpush1.msra.mxu0 0.0
    %594 = vmatprep.subr.mxu0 0.0
    %595 = vmatpush1.msra.mxu0 0.0
    %596 = vmatprep.subr.mxu0 0.0
    %597 = vmatpush1.msra.mxu0 0.0
    %598 = vmatprep.subr.mxu0 0.0
    %599 = vmatpush1.msra.mxu0 0.0
    %600 = vmatprep.subr.mxu0 0.0
    %601 = vmatpush1.msra.mxu0 0.0
    %602 = vmatprep.subr.mxu0 0.0
    %603 = vmatpush1.msra.mxu0 0.0
    %604 = vmatprep.subr.mxu0 0.0
    %605 = vmatpush1.msra.mxu0 0.0
    %606 = vmatprep.subr.mxu0 0.0
    %607 = vmatpush1.msra.mxu0 0.0
    %608 = vmatprep.mubr.f32.mxu0 0.0
    %609 = vmatmul.mubr.f32.gmra.mrb[0].mxu0 %v542
    %v610 = vpop.f32.mrb[0].mxu0
    %v611 = vadd.f32 0.0, %v610
    %v612 = vpop.f32.mrb[0].mxu0
    %613 = vdwg.mxu0
    %v614 = vadd.f32 %v536, %v611
    %616 = vset.pattern.permute.xlu0 0
    %617 = vperm.xlu0 %616, %v372
    %v618 = vpop.permute.xlu0 %617
    %v620 = vadd.f32 %v614, %v618
    %v621 = vmul.f32 %v620, 0.01
    %v622 = vmax.f32 %v620, %v621
    %v623 = vadd.f32 %v622, %v364
    %v624 = vmul.f32 %v623, 0.01
    %v625 = vmax.f32 %v623, %v624
    %v626 = vsel %vm33, %v625, 0.0
    %627 = vst [vmem:[#allocation2 + $0x8] sm:$0xff] %v626
    %s628 = scalar_lea.vmem %s3, 16
    %v629 = vld [vmem:[%s628] sm:$0xff]
    %v630 = vld [vmem:[#allocation2] sm:$0xff]
    %v631 = vld [vmem:[#allocation2 + $0x8] sm:$0xff]
    %s632 = scalar_lea.vmem %s2, 48
    %v633 = vld [vmem:[%s632] sm:$0xff]
    %s634 = scalar_lea.vmem %s2, 56
    %v635 = vld [vmem:[%s634] sm:$0xff]
    %638 = vrot.lane.b32.xlu0 %v630, 2
    %v639 = vpop.permute.xlu0 %638
    %640 = vrot.lane.b32.xlu0 %v631, 2
    %v641 = vpop.permute.xlu0 %640
    %v642 = vsel %vm129, %v639, %v641
    %v645 = vsel %vm51, %v635, 0
    %647 = vmatprep.subr.mxu0 0.0
    %648 = vmatpush1.msra.mxu0 %v642
    %649 = vmatprep.subr.mxu0 0.0
    %650 = vmatpush1.msra.mxu0 0.0
    %651 = vmatprep.subr.mxu0 0.0
    %652 = vmatpush1.msra.mxu0 0.0
    %653 = vmatprep.subr.mxu0 0.0
    %654 = vmatpush1.msra.mxu0 0.0
    %655 = vmatprep.subr.mxu0 0.0
    %656 = vmatpush1.msra.mxu0 0.0
    %657 = vmatprep.subr.mxu0 0.0
    %658 = vmatpush1.msra.mxu0 0.0
    %659 = vmatprep.subr.mxu0 0.0
    %660 = vmatpush1.msra.mxu0 0.0
    %661 = vmatprep.subr.mxu0 0.0
    %662 = vmatpush1.msra.mxu0 0.0
    %663 = vmatprep.subr.mxu0 0.0
    %664 = vmatpush1.msra.mxu0 0.0
    %665 = vmatprep.subr.mxu0 0.0
    %666 = vmatpush1.msra.mxu0 0.0
    %667 = vmatprep.subr.mxu0 0.0
    %668 = vmatpush1.msra.mxu0 0.0
    %669 = vmatprep.subr.mxu0 0.0
    %670 = vmatpush1.msra.mxu0 0.0
    %671 = vmatprep.subr.mxu0 0.0
    %672 = vmatpush1.msra.mxu0 0.0
    %673 = vmatprep.subr.mxu0 0.0
    %674 = vmatpush1.msra.mxu0 0.0
    %675 = vmatprep.subr.mxu0 0.0
    %676 = vmatpush1.msra.mxu0 0.0
    %677 = vmatprep.subr.mxu0 0.0
    %678 = vmatpush1.msra.mxu0 0.0
    %679 = vmatprep.subr.mxu0 0.0
    %680 = vmatpush1.msra.mxu0 0.0
    %681 = vmatprep.subr.mxu0 0.0
    %682 = vmatpush1.msra.mxu0 0.0
    %683 = vmatprep.subr.mxu0 0.0
    %684 = vmatpush1.msra.mxu0 0.0
    %685 = vmatprep.subr.mxu0 0.0
    %686 = vmatpush1.msra.mxu0 0.0
    %687 = vmatprep.subr.mxu0 0.0
    %688 = vmatpush1.msra.mxu0 0.0
    %689 = vmatprep.subr.mxu0 0.0
    %690 = vmatpush1.msra.mxu0 0.0
    %691 = vmatprep.subr.mxu0 0.0
    %692 = vmatpush1.msra.mxu0 0.0
    %693 = vmatprep.subr.mxu0 0.0
    %694 = vmatpush1.msra.mxu0 0.0
    %695 = vmatprep.subr.mxu0 0.0
    %696 = vmatpush1.msra.mxu0 0.0
    %697 = vmatprep.subr.mxu0 0.0
    %698 = vmatpush1.msra.mxu0 0.0
    %699 = vmatprep.subr.mxu0 0.0
    %700 = vmatpush1.msra.mxu0 0.0
    %701 = vmatprep.subr.mxu0 0.0
    %702 = vmatpush1.msra.mxu0 0.0
    %703 = vmatprep.subr.mxu0 0.0
    %704 = vmatpush1.msra.mxu0 0.0
    %705 = vmatprep.subr.mxu0 0.0
    %706 = vmatpush1.msra.mxu0 0.0
    %707 = vmatprep.subr.mxu0 0.0
    %708 = vmatpush1.msra.mxu0 0.0
    %709 = vmatprep.subr.mxu0 0.0
    %710 = vmatpush1.msra.mxu0 0.0
    %711 = vmatprep.mubr.f32.mxu0 0.0
    %712 = vmatmul.mubr.f32.gmra.mrb[0].mxu0 %v645
    %v713 = vpop.f32.mrb[0].mxu0
    %v714 = vadd.f32 0.0, %v713
    %v715 = vpop.f32.mrb[0].mxu0
    %716 = vdwg.mxu0
    %717 = vrot.lane.b32.xlu0 %v630, 4
    %v718 = vpop.permute.xlu0 %717
    %719 = vrot.lane.b32.xlu0 %v631, 4
    %v720 = vpop.permute.xlu0 %719
    %vm721 = vcmask 31744
    %v722 = vsel %vm721, %v718, %v720
    %v725 = vsel %vm51, %v633, 0
    %727 = vmatprep.subr.mxu0 0.0
    %728 = vmatpush1.msra.mxu0 %v722
    %729 = vmatprep.subr.mxu0 0.0
    %730 = vmatpush1.msra.mxu0 0.0
    %731 = vmatprep.subr.mxu0 0.0
    %732 = vmatpush1.msra.mxu0 0.0
    %733 = vmatprep.subr.mxu0 0.0
    %734 = vmatpush1.msra.mxu0 0.0
    %735 = vmatprep.subr.mxu0 0.0
    %736 = vmatpush1.msra.mxu0 0.0
    %737 = vmatprep.subr.mxu0 0.0
    %738 = vmatpush1.msra.mxu0 0.0
    %739 = vmatprep.subr.mxu0 0.0
    %740 = vmatpush1.msra.mxu0 0.0
    %741 = vmatprep.subr.mxu0 0.0
    %742 = vmatpush1.msra.mxu0 0.0
    %743 = vmatprep.subr.mxu0 0.0
    %744 = vmatpush1.msra.mxu0 0.0
    %745 = vmatprep.subr.mxu0 0.0
    %746 = vmatpush1.msra.mxu0 0.0
    %747 = vmatprep.subr.mxu0 0.0
    %748 = vmatpush1.msra.mxu0 0.0
    %749 = vmatprep.subr.mxu0 0.0
    %750 = vmatpush1.msra.mxu0 0.0
    %751 = vmatprep.subr.mxu0 0.0
    %752 = vmatpush1.msra.mxu0 0.0
    %753 = vmatprep.subr.mxu0 0.0
    %754 = vmatpush1.msra.mxu0 0.0
    %755 = vmatprep.subr.mxu0 0.0
    %756 = vmatpush1.msra.mxu0 0.0
    %757 = vmatprep.subr.mxu0 0.0
    %758 = vmatpush1.msra.mxu0 0.0
    %759 = vmatprep.subr.mxu0 0.0
    %760 = vmatpush1.msra.mxu0 0.0
    %761 = vmatprep.subr.mxu0 0.0
    %762 = vmatpush1.msra.mxu0 0.0
    %763 = vmatprep.subr.mxu0 0.0
    %764 = vmatpush1.msra.mxu0 0.0
    %765 = vmatprep.subr.mxu0 0.0
    %766 = vmatpush1.msra.mxu0 0.0
    %767 = vmatprep.subr.mxu0 0.0
    %768 = vmatpush1.msra.mxu0 0.0
    %769 = vmatprep.subr.mxu0 0.0
    %770 = vmatpush1.msra.mxu0 0.0
    %771 = vmatprep.subr.mxu0 0.0
    %772 = vmatpush1.msra.mxu0 0.0
    %773 = vmatprep.subr.mxu0 0.0
    %774 = vmatpush1.msra.mxu0 0.0
    %775 = vmatprep.subr.mxu0 0.0
    %776 = vmatpush1.msra.mxu0 0.0
    %777 = vmatprep.subr.mxu0 0.0
    %778 = vmatpush1.msra.mxu0 0.0
    %779 = vmatprep.subr.mxu0 0.0
    %780 = vmatpush1.msra.mxu0 0.0
    %781 = vmatprep.subr.mxu0 0.0
    %782 = vmatpush1.msra.mxu0 0.0
    %783 = vmatprep.subr.mxu0 0.0
    %784 = vmatpush1.msra.mxu0 0.0
    %785 = vmatprep.subr.mxu0 0.0
    %786 = vmatpush1.msra.mxu0 0.0
    %787 = vmatprep.subr.mxu0 0.0
    %788 = vmatpush1.msra.mxu0 0.0
    %789 = vmatprep.subr.mxu0 0.0
    %790 = vmatpush1.msra.mxu0 0.0
    %791 = vmatprep.mubr.f32.mxu0 0.0
    %792 = vmatmul.mubr.f32.gmra.mrb[0].mxu0 %v725
    %v793 = vpop.f32.mrb[0].mxu0
    %v794 = vadd.f32 %v714, %v793
    %v795 = vpop.f32.mrb[0].mxu0
    %796 = vdwg.mxu0
    %s797 = scalar_lea.vmem %s2, 64
    %v798 = vld [vmem:[%s797] sm:$0xff]
    %v800 = vsel %vm51, %v798, 0
    %802 = vmatprep.subr.mxu0 0.0
    %803 = vmatpush1.msra.mxu0 %v631
    %804 = vmatprep.subr.mxu0 0.0
    %805 = vmatpush1.msra.mxu0 0.0
    %806 = vmatprep.subr.mxu0 0.0
    %807 = vmatpush1.msra.mxu0 0.0
    %808 = vmatprep.subr.mxu0 0.0
    %809 = vmatpush1.msra.mxu0 0.0
    %810 = vmatprep.subr.mxu0 0.0
    %811 = vmatpush1.msra.mxu0 0.0
    %812 = vmatprep.subr.mxu0 0.0
    %813 = vmatpush1.msra.mxu0 0.0
    %814 = vmatprep.subr.mxu0 0.0
    %815 = vmatpush1.msra.mxu0 0.0
    %816 = vmatprep.subr.mxu0 0.0
    %817 = vmatpush1.msra.mxu0 0.0
    %818 = vmatprep.subr.mxu0 0.0
    %819 = vmatpush1.msra.mxu0 0.0
    %820 = vmatprep.subr.mxu0 0.0
    %821 = vmatpush1.msra.mxu0 0.0
    %822 = vmatprep.subr.mxu0 0.0
    %823 = vmatpush1.msra.mxu0 0.0
    %824 = vmatprep.subr.mxu0 0.0
    %825 = vmatpush1.msra.mxu0 0.0
    %826 = vmatprep.subr.mxu0 0.0
    %827 = vmatpush1.msra.mxu0 0.0
    %828 = vmatprep.subr.mxu0 0.0
    %829 = vmatpush1.msra.mxu0 0.0
    %830 = vmatprep.subr.mxu0 0.0
    %831 = vmatpush1.msra.mxu0 0.0
    %832 = vmatprep.subr.mxu0 0.0
    %833 = vmatpush1.msra.mxu0 0.0
    %834 = vmatprep.subr.mxu0 0.0
    %835 = vmatpush1.msra.mxu0 0.0
    %836 = vmatprep.subr.mxu0 0.0
    %837 = vmatpush1.msra.mxu0 0.0
    %838 = vmatprep.subr.mxu0 0.0
    %839 = vmatpush1.msra.mxu0 0.0
    %840 = vmatprep.subr.mxu0 0.0
    %841 = vmatpush1.msra.mxu0 0.0
    %842 = vmatprep.subr.mxu0 0.0
    %843 = vmatpush1.msra.mxu0 0.0
    %844 = vmatprep.subr.mxu0 0.0
    %845 = vmatpush1.msra.mxu0 0.0
    %846 = vmatprep.subr.mxu0 0.0
    %847 = vmatpush1.msra.mxu0 0.0
    %848 = vmatprep.subr.mxu0 0.0
    %849 = vmatpush1.msra.mxu0 0.0
    %850 = vmatprep.subr.mxu0 0.0
    %851 = vmatpush1.msra.mxu0 0.0
    %852 = vmatprep.subr.mxu0 0.0
    %853 = vmatpush1.msra.mxu0 0.0
    %854 = vmatprep.subr.mxu0 0.0
    %855 = vmatpush1.msra.mxu0 0.0
    %856 = vmatprep.subr.mxu0 0.0
    %857 = vmatpush1.msra.mxu0 0.0
    %858 = vmatprep.subr.mxu0 0.0
    %859 = vmatpush1.msra.mxu0 0.0
    %860 = vmatprep.subr.mxu0 0.0
    %861 = vmatpush1.msra.mxu0 0.0
    %862 = vmatprep.subr.mxu0 0.0
    %863 = vmatpush1.msra.mxu0 0.0
    %864 = vmatprep.subr.mxu0 0.0
    %865 = vmatpush1.msra.mxu0 0.0
    %866 = vmatprep.mubr.f32.mxu0 0.0
    %867 = vmatmul.mubr.f32.gmra.mrb[0].mxu0 %v800
    %v868 = vpop.f32.mrb[0].mxu0
    %v869 = vadd.f32 0.0, %v868
    %v870 = vpop.f32.mrb[0].mxu0
    %871 = vdwg.mxu0
    %v872 = vadd.f32 %v794, %v869
    %874 = vset.pattern.permute.xlu0 0
    %875 = vperm.xlu0 %874, %v629
    %v876 = vpop.permute.xlu0 %875
    %v878 = vadd.f32 %v872, %v876
    %v879 = vmul.f32 %v878, 0.01
    %v880 = vmax.f32 %v878, %v879
    %v881 = vsel %vm33, %v880, 0.0
    %882 = vst [vmem:[#allocation2 + $0x8] sm:$0xff] %v881
    %s883 = scalar_lea.vmem %s3, 24
    %v884 = vld [vmem:[%s883] sm:$0xff]
    %v885 = vld [vmem:[#allocation2] sm:$0xff]
    %v886 = vld [vmem:[#allocation2 + $0x8] sm:$0xff]
    %s887 = scalar_lea.vmem %s2, 72
    %v888 = vld [vmem:[%s887] sm:$0xff]
    %s889 = scalar_lea.vmem %s2, 80
    %v890 = vld [vmem:[%s889] sm:$0xff]
    %893 = vrot.lane.b32.xlu0 %v885, 2
    %v894 = vpop.permute.xlu0 %893
    %895 = vrot.lane.b32.xlu0 %v886, 2
    %v896 = vpop.permute.xlu0 %895
    %v897 = vsel %vm129, %v894, %v896
    %v900 = vsel %vm51, %v890, 0
    %902 = vmatprep.subr.mxu0 0.0
    %903 = vmatpush1.msra.mxu0 %v897
    %904 = vmatprep.subr.mxu0 0.0
    %905 = vmatpush1.msra.mxu0 0.0
    %906 = vmatprep.subr.mxu0 0.0
    %907 = vmatpush1.msra.mxu0 0.0
    %908 = vmatprep.subr.mxu0 0.0
    %909 = vmatpush1.msra.mxu0 0.0
    %910 = vmatprep.subr.mxu0 0.0
    %911 = vmatpush1.msra.mxu0 0.0
    %912 = vmatprep.subr.mxu0 0.0
    %913 = vmatpush1.msra.mxu0 0.0
    %914 = vmatprep.subr.mxu0 0.0
    %915 = vmatpush1.msra.mxu0 0.0
    %916 = vmatprep.subr.mxu0 0.0
    %917 = vmatpush1.msra.mxu0 0.0
    %918 = vmatprep.subr.mxu0 0.0
    %919 = vmatpush1.msra.mxu0 0.0
    %920 = vmatprep.subr.mxu0 0.0
    %921 = vmatpush1.msra.mxu0 0.0
    %922 = vmatprep.subr.mxu0 0.0
    %923 = vmatpush1.msra.mxu0 0.0
    %924 = vmatprep.subr.mxu0 0.0
    %925 = vmatpush1.msra.mxu0 0.0
    %926 = vmatprep.subr.mxu0 0.0
    %927 = vmatpush1.msra.mxu0 0.0
    %928 = vmatprep.subr.mxu0 0.0
    %929 = vmatpush1.msra.mxu0 0.0
    %930 = vmatprep.subr.mxu0 0.0
    %931 = vmatpush1.msra.mxu0 0.0
    %932 = vmatprep.subr.mxu0 0.0
    %933 = vmatpush1.msra.mxu0 0.0
    %934 = vmatprep.subr.mxu0 0.0
    %935 = vmatpush1.msra.mxu0 0.0
    %936 = vmatprep.subr.mxu0 0.0
    %937 = vmatpush1.msra.mxu0 0.0
    %938 = vmatprep.subr.mxu0 0.0
    %939 = vmatpush1.msra.mxu0 0.0
    %940 = vmatprep.subr.mxu0 0.0
    %941 = vmatpush1.msra.mxu0 0.0
    %942 = vmatprep.subr.mxu0 0.0
    %943 = vmatpush1.msra.mxu0 0.0
    %944 = vmatprep.subr.mxu0 0.0
    %945 = vmatpush1.msra.mxu0 0.0
    %946 = vmatprep.subr.mxu0 0.0
    %947 = vmatpush1.msra.mxu0 0.0
    %948 = vmatprep.subr.mxu0 0.0
    %949 = vmatpush1.msra.mxu0 0.0
    %950 = vmatprep.subr.mxu0 0.0
    %951 = vmatpush1.msra.mxu0 0.0
    %952 = vmatprep.subr.mxu0 0.0
    %953 = vmatpush1.msra.mxu0 0.0
    %954 = vmatprep.subr.mxu0 0.0
    %955 = vmatpush1.msra.mxu0 0.0
    %956 = vmatprep.subr.mxu0 0.0
    %957 = vmatpush1.msra.mxu0 0.0
    %958 = vmatprep.subr.mxu0 0.0
    %959 = vmatpush1.msra.mxu0 0.0
    %960 = vmatprep.subr.mxu0 0.0
    %961 = vmatpush1.msra.mxu0 0.0
    %962 = vmatprep.subr.mxu0 0.0
    %963 = vmatpush1.msra.mxu0 0.0
    %964 = vmatprep.subr.mxu0 0.0
    %965 = vmatpush1.msra.mxu0 0.0
    %966 = vmatprep.mubr.f32.mxu0 0.0
    %967 = vmatmul.mubr.f32.gmra.mrb[0].mxu0 %v900
    %v968 = vpop.f32.mrb[0].mxu0
    %v969 = vadd.f32 0.0, %v968
    %v970 = vpop.f32.mrb[0].mxu0
    %971 = vdwg.mxu0
    %972 = vrot.lane.b32.xlu0 %v885, 4
    %v973 = vpop.permute.xlu0 %972
    %974 = vrot.lane.b32.xlu0 %v886, 4
    %v975 = vpop.permute.xlu0 %974
    %v976 = vsel %vm721, %v973, %v975
    %v979 = vsel %vm51, %v888, 0
    %981 = vmatprep.subr.mxu0 0.0
    %982 = vmatpush1.msra.mxu0 %v976
    %983 = vmatprep.subr.mxu0 0.0
    %984 = vmatpush1.msra.mxu0 0.0
    %985 = vmatprep.subr.mxu0 0.0
    %986 = vmatpush1.msra.mxu0 0.0
    %987 = vmatprep.subr.mxu0 0.0
    %988 = vmatpush1.msra.mxu0 0.0
    %989 = vmatprep.subr.mxu0 0.0
    %990 = vmatpush1.msra.mxu0 0.0
    %991 = vmatprep.subr.mxu0 0.0
    %992 = vmatpush1.msra.mxu0 0.0
    %993 = vmatprep.subr.mxu0 0.0
    %994 = vmatpush1.msra.mxu0 0.0
    %995 = vmatprep.subr.mxu0 0.0
    %996 = vmatpush1.msra.mxu0 0.0
    %997 = vmatprep.subr.mxu0 0.0
    %998 = vmatpush1.msra.mxu0 0.0
    %999 = vmatprep.subr.mxu0 0.0
    %1000 = vmatpush1.msra.mxu0 0.0
    %1001 = vmatprep.subr.mxu0 0.0
    %1002 = vmatpush1.msra.mxu0 0.0
    %1003 = vmatprep.subr.mxu0 0.0
    %1004 = vmatpush1.msra.mxu0 0.0
    %1005 = vmatprep.subr.mxu0 0.0
    %1006 = vmatpush1.msra.mxu0 0.0
    %1007 = vmatprep.subr.mxu0 0.0
    %1008 = vmatpush1.msra.mxu0 0.0
    %1009 = vmatprep.subr.mxu0 0.0
    %1010 = vmatpush1.msra.mxu0 0.0
    %1011 = vmatprep.subr.mxu0 0.0
    %1012 = vmatpush1.msra.mxu0 0.0
    %1013 = vmatprep.subr.mxu0 0.0
    %1014 = vmatpush1.msra.mxu0 0.0
    %1015 = vmatprep.subr.mxu0 0.0
    %1016 = vmatpush1.msra.mxu0 0.0
    %1017 = vmatprep.subr.mxu0 0.0
    %1018 = vmatpush1.msra.mxu0 0.0
    %1019 = vmatprep.subr.mxu0 0.0
    %1020 = vmatpush1.msra.mxu0 0.0
    %1021 = vmatprep.subr.mxu0 0.0
    %1022 = vmatpush1.msra.mxu0 0.0
    %1023 = vmatprep.subr.mxu0 0.0
    %1024 = vmatpush1.msra.mxu0 0.0
    %1025 = vmatprep.subr.mxu0 0.0
    %1026 = vmatpush1.msra.mxu0 0.0
    %1027 = vmatprep.subr.mxu0 0.0
    %1028 = vmatpush1.msra.mxu0 0.0
    %1029 = vmatprep.subr.mxu0 0.0
    %1030 = vmatpush1.msra.mxu0 0.0
    %1031 = vmatprep.subr.mxu0 0.0
    %1032 = vmatpush1.msra.mxu0 0.0
    %1033 = vmatprep.subr.mxu0 0.0
    %1034 = vmatpush1.msra.mxu0 0.0
    %1035 = vmatprep.subr.mxu0 0.0
    %1036 = vmatpush1.msra.mxu0 0.0
    %1037 = vmatprep.subr.mxu0 0.0
    %1038 = vmatpush1.msra.mxu0 0.0
    %1039 = vmatprep.subr.mxu0 0.0
    %1040 = vmatpush1.msra.mxu0 0.0
    %1041 = vmatprep.subr.mxu0 0.0
    %1042 = vmatpush1.msra.mxu0 0.0
    %1043 = vmatprep.subr.mxu0 0.0
    %1044 = vmatpush1.msra.mxu0 0.0
    %1045 = vmatprep.mubr.f32.mxu0 0.0
    %1046 = vmatmul.mubr.f32.gmra.mrb[0].mxu0 %v979
    %v1047 = vpop.f32.mrb[0].mxu0
    %v1048 = vadd.f32 %v969, %v1047
    %v1049 = vpop.f32.mrb[0].mxu0
    %1050 = vdwg.mxu0
    %s1051 = scalar_lea.vmem %s2, 88
    %v1052 = vld [vmem:[%s1051] sm:$0xff]
    %v1054 = vsel %vm51, %v1052, 0
    %1056 = vmatprep.subr.mxu0 0.0
    %1057 = vmatpush1.msra.mxu0 %v886
    %1058 = vmatprep.subr.mxu0 0.0
    %1059 = vmatpush1.msra.mxu0 0.0
    %1060 = vmatprep.subr.mxu0 0.0
    %1061 = vmatpush1.msra.mxu0 0.0
    %1062 = vmatprep.subr.mxu0 0.0
    %1063 = vmatpush1.msra.mxu0 0.0
    %1064 = vmatprep.subr.mxu0 0.0
    %1065 = vmatpush1.msra.mxu0 0.0
    %1066 = vmatprep.subr.mxu0 0.0
    %1067 = vmatpush1.msra.mxu0 0.0
    %1068 = vmatprep.subr.mxu0 0.0
    %1069 = vmatpush1.msra.mxu0 0.0
    %1070 = vmatprep.subr.mxu0 0.0
    %1071 = vmatpush1.msra.mxu0 0.0
    %1072 = vmatprep.subr.mxu0 0.0
    %1073 = vmatpush1.msra.mxu0 0.0
    %1074 = vmatprep.subr.mxu0 0.0
    %1075 = vmatpush1.msra.mxu0 0.0
    %1076 = vmatprep.subr.mxu0 0.0
    %1077 = vmatpush1.msra.mxu0 0.0
    %1078 = vmatprep.subr.mxu0 0.0
    %1079 = vmatpush1.msra.mxu0 0.0
    %1080 = vmatprep.subr.mxu0 0.0
    %1081 = vmatpush1.msra.mxu0 0.0
    %1082 = vmatprep.subr.mxu0 0.0
    %1083 = vmatpush1.msra.mxu0 0.0
    %1084 = vmatprep.subr.mxu0 0.0
    %1085 = vmatpush1.msra.mxu0 0.0
    %1086 = vmatprep.subr.mxu0 0.0
    %1087 = vmatpush1.msra.mxu0 0.0
    %1088 = vmatprep.subr.mxu0 0.0
    %1089 = vmatpush1.msra.mxu0 0.0
    %1090 = vmatprep.subr.mxu0 0.0
    %1091 = vmatpush1.msra.mxu0 0.0
    %1092 = vmatprep.subr.mxu0 0.0
    %1093 = vmatpush1.msra.mxu0 0.0
    %1094 = vmatprep.subr.mxu0 0.0
    %1095 = vmatpush1.msra.mxu0 0.0
    %1096 = vmatprep.subr.mxu0 0.0
    %1097 = vmatpush1.msra.mxu0 0.0
    %1098 = vmatprep.subr.mxu0 0.0
    %1099 = vmatpush1.msra.mxu0 0.0
    %1100 = vmatprep.subr.mxu0 0.0
    %1101 = vmatpush1.msra.mxu0 0.0
    %1102 = vmatprep.subr.mxu0 0.0
    %1103 = vmatpush1.msra.mxu0 0.0
    %1104 = vmatprep.subr.mxu0 0.0
    %1105 = vmatpush1.msra.mxu0 0.0
    %1106 = vmatprep.subr.mxu0 0.0
    %1107 = vmatpush1.msra.mxu0 0.0
    %1108 = vmatprep.subr.mxu0 0.0
    %1109 = vmatpush1.msra.mxu0 0.0
    %1110 = vmatprep.subr.mxu0 0.0
    %1111 = vmatpush1.msra.mxu0 0.0
    %1112 = vmatprep.subr.mxu0 0.0
    %1113 = vmatpush1.msra.mxu0 0.0
    %1114 = vmatprep.subr.mxu0 0.0
    %1115 = vmatpush1.msra.mxu0 0.0
    %1116 = vmatprep.subr.mxu0 0.0
    %1117 = vmatpush1.msra.mxu0 0.0
    %1118 = vmatprep.subr.mxu0 0.0
    %1119 = vmatpush1.msra.mxu0 0.0
    %1120 = vmatprep.mubr.f32.mxu0 0.0
    %1121 = vmatmul.mubr.f32.gmra.mrb[0].mxu0 %v1054
    %v1122 = vpop.f32.mrb[0].mxu0
    %v1123 = vadd.f32 0.0, %v1122
    %v1124 = vpop.f32.mrb[0].mxu0
    %1125 = vdwg.mxu0
    %v1126 = vadd.f32 %v1048, %v1123
    %1128 = vset.pattern.permute.xlu0 0
    %1129 = vperm.xlu0 %1128, %v884
    %v1130 = vpop.permute.xlu0 %1129
    %v1132 = vadd.f32 %v1126, %v1130
    %v1133 = vmul.f32 %v1132, 0.01
    %v1134 = vmax.f32 %v1132, %v1133
    %v1135 = vadd.f32 %v1134, %v625
    %v1136 = vmul.f32 %v1135, 0.01
    %v1137 = vmax.f32 %v1135, %v1136
    %1138 = vst [vmem:[#allocation3] sm:$0xff] %v1137
    // Predicated region
    $region26: #{tpu_custom_call.1} parent=1 // pred_check
      _
    $region27: #{tpu_custom_call.1} parent=1 // pred_check_branch
      %1140 = sbr.rel (0) target = $region29
    $region28: #{tpu_custom_call.1} parent=1 // pred_region
      %s1142 = ssub.s32 128, 128
      %1143 = vsyncadd [#allocation4], %s1142
      %s1145 = sshll.u32 [#allocation3], 4
      %s1146 = int_to_ptr.vmem [resolvable:$true] %s1145
      %1148 = dma.vmem_to_hbm [thread:$0]  %s1146, 128, %s6, [#allocation4]
    $region29: #{tpu_custom_call.1} parent=1 // pred_fallthru
      _
    // Predicated region
    $region30: #{tpu_custom_call.1} parent=1 // pred_check
      _
    $region31: #{tpu_custom_call.1} parent=1 // pred_check_branch
      %1150 = sbr.rel (0) target = $region33
    $region32: #{tpu_custom_call.1} parent=1 // pred_region
      %1151 = dma.done [#allocation4], 128
    $region33: #{tpu_custom_call.1} parent=1 // pred_fallthru
      _
    %1152 = vsyncpa [#allocation4], 1

</llo_original>
